<compile_context>
chip_gen: v7x
topology: tpu7x:2x2x1
jax: 0.10.0
libtpu: 0.0.40
codegen_flags: <defaults>
</compile_context>

<pallas_src>
import functools
import math

import jax
import jax.numpy as jnp
from jax.experimental import pallas as pl
from jax.experimental.pallas import tpu as pltpu


def _cdiv(a, b):
    return -(-a // b)


def _round_up(x, m):
    return _cdiv(x, m) * m


# ----------------------------------------------------------------------------
# Kernels
# ----------------------------------------------------------------------------
def _encoder_resident_kernel(x_ref, w1_ref, b1_ref, wh_ref, bh_ref, out_ref):
    """Small-vocab fast path: W1 resident in VMEM, grid = (batch tiles,)."""
    # Cast doc_bow tile in-kernel (VPU cast hidden under MXU/DMA).
    x = x_ref[...].astype(w1_ref.dtype)
    h = jnp.dot(x, w1_ref[...], preferred_element_type=jnp.float32)
    h = jnp.tanh(h + b1_ref[...])        # dropout = identity in eval mode
    out_ref[...] = (
        jnp.dot(h.astype(wh_ref.dtype), wh_ref[...],
                preferred_element_type=jnp.float32)
        + bh_ref[...]
    )


def _encoder_tiled_kernel(x_ref, w1_ref, b1_ref, wh_ref, bh_ref, out_ref, acc_ref,
                          *, v_valid, tv):
    """Large-vocab path: grid = (batch tiles, vocab tiles) with f32 accumulator."""
    k = pl.program_id(1)
    nk = pl.num_programs(1)

    @pl.when(k == 0)
    def _():
        acc_ref[...] = jnp.zeros_like(acc_ref)

    x = x_ref[...]
    if v_valid % tv != 0:
        # doc_bow is NOT padded along V; zero the out-of-range columns of the
        # last vocab tile so stale VMEM (possibly NaN/Inf) never hits the MXU.
        col = jax.lax.broadcasted_iota(jnp.int32, x.shape, 1)
        limit = jnp.where(k == nk - 1, v_valid - k * tv, tv)
        x = jnp.where(col < limit, x, 0.0)

    acc_ref[...] += jnp.dot(x.astype(w1_ref.dtype), w1_ref[...],
                            preferred_element_type=jnp.float32)

    @pl.when(k == nk - 1)
    def _():
        h = jnp.tanh(acc_ref[...] + b1_ref[...])   # dropout = identity (eval)
        out_ref[...] = (
            jnp.dot(h.astype(wh_ref.dtype), wh_ref[...],
                    preferred_element_type=jnp.float32)
            + bh_ref[...]
        )


# ----------------------------------------------------------------------------
# Wrapper
# ----------------------------------------------------------------------------
def inference_network_forward(doc_bow, params, *, compute_dtype=jnp.bfloat16,
                              block_b=128, block_v=1024, force_tiled=False,
                              resident_vmem_budget=12 * 1024 * 1024):
    """Inference_network forward: returns (mu [B,T], logsig [B,T], KL [B])."""
    B, V = doc_bow.shape
    H = params["w1"].shape[1]
    T = params["wmu"].shape[1]
    T2 = 2 * T
    T2p = _round_up(T2, 128)                 # lane-dense fused head width
    csize = jnp.dtype(compute_dtype).itemsize
    xsize = jnp.dtype(doc_bow.dtype).itemsize

    # Batch tiling: tile B exactly (no padded rows in the common case); an even
    # number of balanced batch tiles also feeds v7x's two TensorCores.
    # (On v6e with B >= 256, pass block_b=256 to halve W1 re-reads.)
    nbt = max(1, _cdiv(B, block_b))
    tb = _round_up(_cdiv(B, nbt), 16)
    Bp = tb * nbt
    x = doc_bow
    if Bp != B:
        # Rare fallback (B not expressible as nbt balanced 16-multiples);
        # padded rows produce garbage that is sliced off below.
        x = jnp.pad(x, ((0, Bp - B), (0, 0)))

    # Fuse the (mu || logsig) heads into one matmul; zero-pad to lane-dense width.
    w_head = jnp.concatenate([params["wmu"], params["wls"]], axis=1)
    b_head = jnp.concatenate([params["bmu"], params["bls"]], axis=1)
    if T2p != T2:
        w_head = jnp.pad(w_head, ((0, 0), (0, T2p - T2)))
        b_head = jnp.pad(b_head, ((0, 0), (0, T2p - T2)))
    wh = w_head.astype(compute_dtype)
    bh = b_head.reshape(1, T2p).astype(jnp.float32)
    b1 = params["b1"].reshape(1, H).astype(jnp.float32)
    w1 = params["w1"].astype(compute_dtype)   # weights only: cheap one-time cast

    # Double-buffered VMEM estimate for the resident-W1 fast path.
    resident_vmem = (2 * (tb * V * xsize + V * H * csize + tb * T2p * 4
                          + H * T2p * csize) + tb * H * 4)
    use_resident = (not force_tiled) and resident_vmem <= resident_vmem_budget

    common_bytes = B * V * xsize + H * T2p * csize + Bp * T2p * 4
    flops = 2 * B * V * H + 2 * B * H * T2p

    if use_resident:
        # W1 resident: DMA'd once (constant index_map), no reduction axis.
        # TODO(synk): pipeline_mode=pl.Buffered(1) on the constant-index weight
        #             inputs would halve their VMEM; skipped for portability.
        cost = pl.CostEstimate(
            flops=int(flops), transcendentals=int(B * H),
            bytes_accessed=int(common_bytes + V * H * csize))
        out = pl.pallas_call(
            _encoder_resident_kernel,
            out_shape=jax.ShapeDtypeStruct((Bp, T2p), jnp.float32),
            grid_spec=pltpu.PrefetchScalarGridSpec(
                num_scalar_prefetch=0,
                grid=(nbt,),
                in_specs=[
                    pl.BlockSpec((tb, V), lambda i: (i, 0)),     # doc_bow (f32)
                    pl.BlockSpec((V, H), lambda i: (0, 0)),      # W1 resident
                    pl.BlockSpec((1, H), lambda i: (0, 0)),      # b1
                    pl.BlockSpec((H, T2p), lambda i: (0, 0)),    # fused head W
                    pl.BlockSpec((1, T2p), lambda i: (0, 0)),    # fused head b
                ],
                out_specs=pl.BlockSpec((tb, T2p), lambda i: (i, 0)),
            ),
            compiler_params=pltpu.CompilerParams(
                dimension_semantics=("parallel",),
                vmem_limit_bytes=32 * 1024 * 1024,
            ),
            cost_estimate=cost,
        )(x, w1, b1, wh, bh)
    else:
        tv = min(block_v, _round_up(V, 128))
        nkt = _cdiv(V, tv)
        Vp = nkt * tv
        if Vp != V:
            # Pad weights only (cheap); doc_bow stays unpadded (masked in-kernel).
            w1 = jnp.pad(w1, ((0, Vp - V), (0, 0)))
        kernel = functools.partial(_encoder_tiled_kernel, v_valid=V, tv=tv)
        cost = pl.CostEstimate(
            flops=int(flops), transcendentals=int(B * H),
            bytes_accessed=int(common_bytes + nbt * Vp * H * csize))
        out = pl.pallas_call(
            kernel,
            out_shape=jax.ShapeDtypeStruct((Bp, T2p), jnp.float32),
            grid_spec=pltpu.PrefetchScalarGridSpec(
                num_scalar_prefetch=0,
                grid=(nbt, nkt),
                in_specs=[
                    pl.BlockSpec((tb, tv), lambda i, k: (i, k)),   # doc_bow tile
                    pl.BlockSpec((tv, H), lambda i, k: (k, 0)),    # W1 tile
                    pl.BlockSpec((1, H), lambda i, k: (0, 0)),     # b1
                    pl.BlockSpec((H, T2p), lambda i, k: (0, 0)),   # fused head W
                    pl.BlockSpec((1, T2p), lambda i, k: (0, 0)),   # fused head b
                ],
                out_specs=pl.BlockSpec((tb, T2p), lambda i, k: (i, 0)),
                scratch_shapes=[pltpu.VMEM((tb, H), jnp.float32)],
            ),
            compiler_params=pltpu.CompilerParams(
                dimension_semantics=("parallel", "arbitrary"),
                vmem_limit_bytes=32 * 1024 * 1024,
            ),
            cost_estimate=cost,
        )(x, w1, b1, wh, bh)

    head = out[:B]
    mu = head[:, :T]
    logsig = head[:, T:T2]
    # KL in the (cheap) wrapper: avoids a lane-sparse [B, 1] kernel output.
    kl = -0.5 * jnp.sum(1.0 - mu * mu + 2.0 * logsig - jnp.exp(2.0 * logsig), axis=1)
    return mu, logsig, kl


# ----------------------------------------------------------------------------
# Params / reference
# ----------------------------------------------------------------------------
def init_params(key, vocabulary_size, n_hidden, n_topics):
    """Deterministic init mirroring the PyTorch __init__ (W as [in, out])."""
    k1, k2, k3, k4 = jax.random.split(key, 4)

    def xavier_uniform(k, fan_in, fan_out):
        limit = math.sqrt(6.0 / (fan_in + fan_out))
        return jax.random.uniform(k, (fan_in, fan_out), jnp.float32, -limit, limit)

    def default_bias(k, fan_in, n):
        bound = 1.0 / math.sqrt(fan_in)
        return jax.random.uniform(k, (1, n), jnp.float32, -bound, bound)

    return {
        # self.linear: Linear(V, H), xavier_uniform weight, default-init bias
        "w1": xavier_uniform(k1, vocabulary_size, n_hidden),
        "b1": default_bias(k2, vocabulary_size, n_hidden),
        # self.mu: Linear(H, T), xavier_uniform weight, default-init bias
        "wmu": xavier_uniform(k3, n_hidden, n_topics),
        "bmu": default_bias(k4, n_hidden, n_topics),
        # self.logsig: Linear(H, T), weight and bias filled with 0.0
        "wls": jnp.zeros((n_hidden, n_topics), jnp.float32),
        "bls": jnp.zeros((1, n_topics), jnp.float32),
    }


def reference_forward(doc_bow, params):
    """Pure-JAX reference (full-f32 matmuls) for correctness checking."""
    hp = jax.lax.Precision.HIGHEST
    h = jnp.tanh(jnp.dot(doc_bow, params["w1"], precision=hp) + params["b1"])
    mu = jnp.dot(h, params["wmu"], precision=hp) + params["bmu"]
    logsig = jnp.dot(h, params["wls"], precision=hp) + params["bls"]
    kl = -0.5 * jnp.sum(1.0 - mu**2 + 2.0 * logsig - jnp.exp(2.0 * logsig), axis=1)
    return mu, logsig, kl


# ----------------------------------------------------------------------------
# Demo / self-test
# ----------------------------------------------------------------------------
if __name__ == "__main__":
    # Module defaults: vocab=2000, hidden=256, topics=50. B=160 exercises exact
    # batch tiling (2 tiles of 80); T=50 -> 2T=100 exercises the lane-dense
    # head padding to 128.
    B, VOCAB, HIDDEN, TOPICS = 160, 2000, 256, 50

    key = jax.random.PRNGKey(0)
    k_params, k_data = jax.random.split(key)

    params = init_params(k_params, VOCAB, HIDDEN, TOPICS)
    # Synthetic bag-of-words counts (non-negative integers 0..4).
    doc_bow = jnp.floor(jax.random.uniform(k_data, (B, VOCAB), jnp.float32) * 5.0)

    mu_ref, logsig_ref, kl_ref = reference_forward(doc_bow, params)

    # 1) Resident-W1 fast path, f32 compute: tight correctness check.
    mu, logsig, kl = inference_network_forward(
        doc_bow, params, compute_dtype=jnp.float32)
    jax.block_until_ready((mu, logsig, kl))
    assert mu.shape == (B, TOPICS) and logsig.shape == (B, TOPICS) and kl.shape == (B,)
    assert jnp.allclose(mu, mu_ref, atol=5e-3, rtol=5e-3)
    assert jnp.allclose(logsig, logsig_ref, atol=5e-3, rtol=5e-3)
    assert jnp.allclose(kl, kl_ref, atol=5e-1, rtol=1e-2)

    # 2) Resident-W1 fast path, bf16 compute (default fast path): loose check.
    mu_b, logsig_b, kl_b = inference_network_forward(doc_bow, params)
    jax.block_until_ready((mu_b, logsig_b, kl_b))
    assert jnp.allclose(mu_b, mu_ref, atol=1e-1, rtol=5e-2)
    assert jnp.allclose(logsig_b, logsig_ref, atol=1e-3, rtol=1e-3)
    assert jnp.allclose(kl_b, kl_ref, atol=2.0, rtol=1e-1)

    # 3) Tiled (large-vocab) path, f32: validates the vocab-reduction
    #    accumulator and the unpadded-doc_bow tail-column masking.
    mu_t, logsig_t, kl_t = inference_network_forward(
        doc_bow, params, compute_dtype=jnp.float32, force_tiled=True, block_v=512)
    jax.block_until_ready((mu_t, logsig_t, kl_t))
    assert jnp.allclose(mu_t, mu_ref, atol=5e-3, rtol=5e-3)
    assert jnp.allclose(logsig_t, logsig_ref, atol=5e-3, rtol=5e-3)
    assert jnp.allclose(kl_t, kl_ref, atol=5e-1, rtol=1e-2)

    # 4) Tiled path, bf16 (production combo for large vocabularies): loose check.
    mu_tb, logsig_tb, kl_tb = inference_network_forward(
        doc_bow, params, force_tiled=True, block_v=512)
    jax.block_until_ready((mu_tb, logsig_tb, kl_tb))
    assert jnp.allclose(mu_tb, mu_ref, atol=1e-1, rtol=5e-2)
    assert jnp.allclose(kl_tb, kl_ref, atol=2.0, rtol=1e-1)

    print("KERNEL_OK")
</pallas_src>

<mosaic_0001>
module attributes {stable_mosaic.version = 11 : i64} {
  func.func @_encoder_resident_kernel(%arg0: i32, %arg1: memref<80x2000xf32, #tpu.memory_space<vmem>>, %arg2: memref<2000x256xf32, #tpu.memory_space<vmem>>, %arg3: memref<1x256xf32, #tpu.memory_space<vmem>>, %arg4: memref<256x128xf32, #tpu.memory_space<vmem>>, %arg5: memref<1x128xf32, #tpu.memory_space<vmem>>, %arg6: memref<80x128xf32, #tpu.memory_space<vmem>>) attributes {dimension_semantics = [#tpu.dimension_semantics<parallel>], iteration_bounds = array<i64: 2>, scalar_prefetch = 0 : i64, scratch_operands = 0 : i64, tpu.core_type = #tpu.core_type<tc>, window_params = [{transform_indices = @transform_0, window_bounds = array<i64: 80, 2000>}, {pipeline_mode = #tpu.pipeline_mode<synchronous>, transform_indices = @transform_1, window_bounds = array<i64: 2000, 256>}, {pipeline_mode = #tpu.pipeline_mode<synchronous>, transform_indices = @transform_2, window_bounds = array<i64: 1, 256>}, {pipeline_mode = #tpu.pipeline_mode<synchronous>, transform_indices = @transform_3, window_bounds = array<i64: 256, 128>}, {pipeline_mode = #tpu.pipeline_mode<synchronous>, transform_indices = @transform_4, window_bounds = array<i64: 1, 128>}, {transform_indices = @transform_5, window_bounds = array<i64: 80, 128>}]} {
    %c0 = arith.constant 0 : index
    %c0_0 = arith.constant 0 : index
    %0 = vector.load %arg1[%c0, %c0_0] : memref<80x2000xf32, #tpu.memory_space<vmem>>, vector<80x2000xf32>
    %c0_1 = arith.constant 0 : index
    %c0_2 = arith.constant 0 : index
    %1 = vector.load %arg2[%c0_1, %c0_2] : memref<2000x256xf32, #tpu.memory_space<vmem>>, vector<2000x256xf32>
    %cst = arith.constant dense<0.000000e+00> : vector<80x256xf32>
    %2 = tpu.matmul %0, %1, %cst {dimension_numbers = #tpu.dot_dimension_numbers<[1], [0], [0], [1], [0, 0, 1, 1], [], []>} : vector<80x2000xf32>, vector<2000x256xf32>, vector<80x256xf32> -> vector<80x256xf32>
    %c0_3 = arith.constant 0 : index
    %c0_4 = arith.constant 0 : index
    %3 = vector.load %arg3[%c0_3, %c0_4] : memref<1x256xf32, #tpu.memory_space<vmem>>, vector<1x256xf32>
    %4 = vector.broadcast %3 : vector<1x256xf32> to vector<80x256xf32>
    %5 = arith.addf %2, %4 : vector<80x256xf32>
    %6 = math.tanh %5 : vector<80x256xf32>
    %c0_5 = arith.constant 0 : index
    %c0_6 = arith.constant 0 : index
    %7 = vector.load %arg4[%c0_5, %c0_6] : memref<256x128xf32, #tpu.memory_space<vmem>>, vector<256x128xf32>
    %cst_7 = arith.constant dense<0.000000e+00> : vector<80x128xf32>
    %8 = tpu.matmul %6, %7, %cst_7 {dimension_numbers = #tpu.dot_dimension_numbers<[1], [0], [0], [1], [0, 0, 1, 1], [], []>} : vector<80x256xf32>, vector<256x128xf32>, vector<80x128xf32> -> vector<80x128xf32>
    %c0_8 = arith.constant 0 : index
    %c0_9 = arith.constant 0 : index
    %9 = vector.load %arg5[%c0_8, %c0_9] : memref<1x128xf32, #tpu.memory_space<vmem>>, vector<1x128xf32>
    %10 = vector.broadcast %9 : vector<1x128xf32> to vector<80x128xf32>
    %11 = arith.addf %8, %10 : vector<80x128xf32>
    %c0_10 = arith.constant 0 : index
    %c0_11 = arith.constant 0 : index
    %12 = vector.load %arg6[%c0_10, %c0_11] : memref<80x128xf32, #tpu.memory_space<vmem>>, vector<80x128xf32>
    tpu.vector_store %arg6[%c0_10, %c0_11], %11 {strides = array<i32>} : memref<80x128xf32, #tpu.memory_space<vmem>>, vector<80x128xf32>,
    return
  }
  func.func @transform_0(%arg0: i32) -> (i32, i32) {
    %c0_i32 = arith.constant 0 : i32
    %c0_i32_0 = arith.constant 0 : i32
    return %arg0, %c0_i32 : i32, i32
  }
  func.func @transform_1(%arg0: i32) -> (i32, i32) {
    %c0_i32 = arith.constant 0 : i32
    %c0_i32_0 = arith.constant 0 : i32
    %c0_i32_1 = arith.constant 0 : i32
    return %c0_i32, %c0_i32_0 : i32, i32
  }
  func.func @transform_2(%arg0: i32) -> (i32, i32) {
    %c0_i32 = arith.constant 0 : i32
    %c0_i32_0 = arith.constant 0 : i32
    %c0_i32_1 = arith.constant 0 : i32
    return %c0_i32, %c0_i32_0 : i32, i32
  }
  func.func @transform_3(%arg0: i32) -> (i32, i32) {
    %c0_i32 = arith.constant 0 : i32
    %c0_i32_0 = arith.constant 0 : i32
    %c0_i32_1 = arith.constant 0 : i32
    return %c0_i32, %c0_i32_0 : i32, i32
  }
  func.func @transform_4(%arg0: i32) -> (i32, i32) {
    %c0_i32 = arith.constant 0 : i32
    %c0_i32_0 = arith.constant 0 : i32
    %c0_i32_1 = arith.constant 0 : i32
    return %c0_i32, %c0_i32_0 : i32, i32
  }
  func.func @transform_5(%arg0: i32) -> (i32, i32) {
    %c0_i32 = arith.constant 0 : i32
    %c0_i32_0 = arith.constant 0 : i32
    return %arg0, %c0_i32 : i32, i32
  }
}

</mosaic_0001>

<llo_original>
// kernel: tpu_custom_call.1
$region0: #{tpu_custom_call.1}
  #allocation0 [shape = 'u32[]', space=smem, size = 0x4, offset = 0x4, fixed_abs, tag = 'smem constant byte address 0x4 - core index']
  #allocation1 [shape = 'u32[144,128]{1,0:T(1,128)}', space=vmem, size = 0x12000, scoped, tag = 'internal scratch']
  %s0 = inlined_call_operand.hbm [shape: f32[160,2000], index: 0, kind: input, shape index: {}]
  %s1 = inlined_call_operand.hbm [shape: f32[2000,256], index: 1, kind: input, shape index: {}]
  %s2 = inlined_call_operand.hbm [shape: f32[1,256], index: 2, kind: input, shape index: {}]
  %s3 = inlined_call_operand.hbm [shape: f32[256,128], index: 3, kind: input, shape index: {}]
  %s4 = inlined_call_operand.hbm [shape: f32[1,128], index: 4, kind: input, shape index: {}]
  %s5 = inlined_call_operand.hbm [shape: f32[160,128], index: 5, kind: output, shape index: {}]
  %s6 = sld [smem:[#allocation0]]
  $region73: #{tpu_custom_call.1} parent=0
    _
  %s8 = ssub.s32 1, %s6
  %s9 = scalar_select 0, %s8, %s6
  $region1: #{tpu_custom_call.1} parent=0
    #allocation2 [shape = 'u8[1310720]{0}', space=vmem, size = 0x140000, scoped, tag = 'input window, operand 0']
    #allocation3 [shape = 's32[2]{0}', space=sflag, size = 0x8, scoped, tag = 'scoped memory for tpu_custom_call.1']
    #allocation4 [shape = 's32[2]{0}', space=sflag, size = 0x8, scoped, tag = 'scoped memory for tpu_custom_call.1']
    #allocation5 [shape = 'u8[2048000]{0}', space=vmem, size = 0x1f4000, scoped, tag = 'input window, operand 1, single buffered']
    #allocation6 [shape = 's32[1]{0}', space=sflag, size = 0x4, scoped, tag = 'scoped memory for tpu_custom_call.1']
    #allocation7 [shape = 'u8[1024]{0}', space=vmem, size = 0x400, scoped, tag = 'input window, operand 2, single buffered']
    #allocation8 [shape = 'u8[131072]{0}', space=vmem, size = 0x20000, scoped, tag = 'input window, operand 3, single buffered']
    #allocation9 [shape = 's32[1]{0}', space=sflag, size = 0x4, scoped, tag = 'scoped memory for tpu_custom_call.1']
    #allocation10 [shape = 'u8[512]{0}', space=vmem, size = 0x400, scoped, tag = 'input window, operand 4, single buffered']
    #allocation11 [shape = 'u8[81920]{0}', space=vmem, size = 0x14000, scoped, tag = 'output window, operand 0']
    %10 = vsyncpa [#allocation3], 0
    %s11 = scalar_lea.sflag [#allocation3], 1
    %12 = vsyncpa %s11, 0
    %13 = vsyncpa [#allocation6], 0
    %14 = vsyncpa [#allocation9], 0
    %15 = vsyncpa [#allocation4], 0
    %s16 = scalar_lea.sflag [#allocation4], 1
    %17 = vsyncpa %s16, 0
    loop: start=0, step=1, limit=4
    $region2: #{tpu_custom_call.1} parent=1 // loop_pre_header
      _
    $region3: #{tpu_custom_call.1} parent=1 // loop_header
      %s19 = sphi 0, %s23
      %p20 = scmp.ge.s32.totalorder %s19, 4
      %s29 = sphi 0, %s31
      %s32 = sphi 0, %s29
      %s33 = sphi 0, %s32
      %s49 = sphi 0, %s33
      %s53 = sphi 0, %s53
      %s55 = sphi 0, %s53
      %s56 = sphi 0, %s55
      %s70 = sphi 0, %s56
      %s74 = sphi 0, %s74
      %s76 = sphi 0, %s74
      %s77 = sphi 0, %s76
      %s91 = sphi 0, %s77
      %s95 = sphi 0, %s95
      %s97 = sphi 0, %s95
      %s98 = sphi 0, %s97
      %s112 = sphi 0, %s98
      %s116 = sphi 0, %s116
      %s118 = sphi 0, %s116
      %s119 = sphi 0, %s118
      %s133 = sphi 0, %s119
      %s139 = sphi 0, %s141
      %s142 = sphi 0, %s139
      %s143 = sphi 0, %s142
      %s159 = sphi 0, %s143
    $region4: #{tpu_custom_call.1} parent=1 // loop_header_branch
      %22 = sbr.rel (%p20) target = $region8
    $region5: #{tpu_custom_call.1} parent=1 // loop_body
      %s24 = ssub.s32 %s19, 1
      %s25 = ssub.s32 %s19, 2
      %s26 = sadd.s32 %s19, 1
      %s27 = ssub.s32 %s19, %s26
      %p28 = scmp.eq.s32.totalorder %s27, 0
      %s30 = sadd.s32 %s29, 1
      %s31 = scalar_select %p28, %s29, %s30
      %p34 = pneg %p28
      %p35 = scmp.eq.s32.totalorder %s19, 1
      %p36 = por %p34, %p35
      %p37 = scmp.ne.s32.totalorder %s29, %s32
      %p38 = scmp.eq.s32.totalorder %s19, 0
      %p39 = por %p37, %p38
      %p40 = scmp.ne.s32.totalorder %s29, %s32
      %p41 = scmp.eq.s32.totalorder %s24, 1
      %p42 = por %p40, %p41
      %p43 = scmp.ne.s32.totalorder %s32, %s33
      %p44 = scmp.eq.s32.totalorder %s24, 0
      %p45 = por %p43, %p44
      %p46 = scmp.ne.s32.totalorder %s32, %s33
      %p47 = scmp.eq.s32.totalorder %s25, 1
      %p48 = por %p46, %p47
      %p50 = scmp.ne.s32.totalorder %s33, %s49
      %p51 = scmp.eq.s32.totalorder %s25, 0
      %p52 = por %p50, %p51
      %s54 = sadd.s32 %s53, 1
      %p57 = scmp.eq.s32.totalorder %s19, 1
      %p58 = scmp.ne.s32.totalorder %s53, %s55
      %p59 = scmp.eq.s32.totalorder %s19, 0
      %p60 = por %p58, %p59
      %p61 = scmp.ne.s32.totalorder %s53, %s55
      %p62 = scmp.eq.s32.totalorder %s24, 1
      %p63 = por %p61, %p62
      %p64 = scmp.ne.s32.totalorder %s55, %s56
      %p65 = scmp.eq.s32.totalorder %s24, 0
      %p66 = por %p64, %p65
      %p67 = scmp.ne.s32.totalorder %s55, %s56
      %p68 = scmp.eq.s32.totalorder %s25, 1
      %p69 = por %p67, %p68
      %p71 = scmp.ne.s32.totalorder %s56, %s70
      %p72 = scmp.eq.s32.totalorder %s25, 0
      %p73 = por %p71, %p72
      %s75 = sadd.s32 %s74, 1
      %p78 = scmp.eq.s32.totalorder %s19, 1
      %p79 = scmp.ne.s32.totalorder %s74, %s76
      %p80 = scmp.eq.s32.totalorder %s19, 0
      %p81 = por %p79, %p80
      %p82 = scmp.ne.s32.totalorder %s74, %s76
      %p83 = scmp.eq.s32.totalorder %s24, 1
      %p84 = por %p82, %p83
      %p85 = scmp.ne.s32.totalorder %s76, %s77
      %p86 = scmp.eq.s32.totalorder %s24, 0
      %p87 = por %p85, %p86
      %p88 = scmp.ne.s32.totalorder %s76, %s77
      %p89 = scmp.eq.s32.totalorder %s25, 1
      %p90 = por %p88, %p89
      %p92 = scmp.ne.s32.totalorder %s77, %s91
      %p93 = scmp.eq.s32.totalorder %s25, 0
      %p94 = por %p92, %p93
      %s96 = sadd.s32 %s95, 1
      %p99 = scmp.eq.s32.totalorder %s19, 1
      %p100 = scmp.ne.s32.totalorder %s95, %s97
      %p101 = scmp.eq.s32.totalorder %s19, 0
      %p102 = por %p100, %p101
      %p103 = scmp.ne.s32.totalorder %s95, %s97
      %p104 = scmp.eq.s32.totalorder %s24, 1
      %p105 = por %p103, %p104
      %p106 = scmp.ne.s32.totalorder %s97, %s98
      %p107 = scmp.eq.s32.totalorder %s24, 0
      %p108 = por %p106, %p107
      %p109 = scmp.ne.s32.totalorder %s97, %s98
      %p110 = scmp.eq.s32.totalorder %s25, 1
      %p111 = por %p109, %p110
      %p113 = scmp.ne.s32.totalorder %s98, %s112
      %p114 = scmp.eq.s32.totalorder %s25, 0
      %p115 = por %p113, %p114
      %s117 = sadd.s32 %s116, 1
      %p120 = scmp.eq.s32.totalorder %s19, 1
      %p121 = scmp.ne.s32.totalorder %s116, %s118
      %p122 = scmp.eq.s32.totalorder %s19, 0
      %p123 = por %p121, %p122
      %p124 = scmp.ne.s32.totalorder %s116, %s118
      %p125 = scmp.eq.s32.totalorder %s24, 1
      %p126 = por %p124, %p125
      %p127 = scmp.ne.s32.totalorder %s118, %s119
      %p128 = scmp.eq.s32.totalorder %s24, 0
      %p129 = por %p127, %p128
      %p130 = scmp.ne.s32.totalorder %s118, %s119
      %p131 = scmp.eq.s32.totalorder %s25, 1
      %p132 = por %p130, %p131
      %p134 = scmp.ne.s32.totalorder %s119, %s133
      %p135 = scmp.eq.s32.totalorder %s25, 0
      %p136 = por %p134, %p135
      %s137 = ssub.s32 %s19, %s26
      %p138 = scmp.eq.s32.totalorder %s137, 0
      %s140 = sadd.s32 %s139, 1
      %s141 = scalar_select %p138, %s139, %s140
      %p144 = pneg %p138
      %p145 = scmp.eq.s32.totalorder %s19, 1
      %p146 = por %p144, %p145
      %p147 = scmp.ne.s32.totalorder %s139, %s142
      %p148 = scmp.eq.s32.totalorder %s19, 0
      %p149 = por %p147, %p148
      %p150 = scmp.ne.s32.totalorder %s139, %s142
      %p151 = scmp.eq.s32.totalorder %s24, 1
      %p152 = por %p150, %p151
      %p153 = scmp.ne.s32.totalorder %s142, %s143
      %p154 = scmp.eq.s32.totalorder %s24, 0
      %p155 = por %p153, %p154
      %p156 = scmp.ne.s32.totalorder %s142, %s143
      %p157 = scmp.eq.s32.totalorder %s25, 1
      %p158 = por %p156, %p157
      %p160 = scmp.ne.s32.totalorder %s143, %s159
      %p161 = scmp.eq.s32.totalorder %s25, 0
      %p162 = por %p160, %p161
      %p163 = scmp.le.s32.totalorder 1, %s19
      %p164 = scmp.lt.s32.totalorder %s19, 3
      %p165 = pnand %p163, %p164
      %p166 = pneg %p165
      // Predicated region
      $region9: #{tpu_custom_call.1} parent=5 // pred_check
        _
      $region10: #{tpu_custom_call.1} parent=5 // pred_check_branch
        %168 = sbr.rel (%p165) target = $region12
      $region11: #{tpu_custom_call.1} parent=5 // pred_region
        %s169 = ssub.s32 %s19, 1
        // Predicated region
        $region13: #{tpu_custom_call.1} parent=11 // pred_check
          %p170 = pneg %p66
        $region14: #{tpu_custom_call.1} parent=11 // pred_check_branch
          %172 = sbr.rel (%p170) target = $region16
        $region15: #{tpu_custom_call.1} parent=11 // pred_region
          %s174 = ssub.s32 64000, 64000
          %175 = vsyncadd [#allocation6], %s174
          %s176 = sshll.u32 [#allocation5], 4
          %s177 = int_to_ptr.vmem [resolvable:$true] %s176
          %182 = dma.hbm_to_vmem [thread:$0]  %s1, 64000, %s177, [#allocation6], 256, 256, 16
        $region16: #{tpu_custom_call.1} parent=11 // pred_fallthru
          _
        // Predicated region
        $region17: #{tpu_custom_call.1} parent=11 // pred_check
          %p183 = pneg %p87
        $region18: #{tpu_custom_call.1} parent=11 // pred_check_branch
          %185 = sbr.rel (%p183) target = $region20
        $region19: #{tpu_custom_call.1} parent=11 // pred_region
          %s187 = ssub.s32 32, 32
          %188 = vsyncadd [#allocation6], %s187
          %s190 = sshll.u32 [#allocation7], 4
          %s191 = int_to_ptr.vmem [resolvable:$true] %s190
          %193 = dma.hbm_to_vmem [thread:$0]  %s2, 32, %s191, [#allocation6]
        $region20: #{tpu_custom_call.1} parent=11 // pred_fallthru
          _
        // Predicated region
        $region21: #{tpu_custom_call.1} parent=11 // pred_check
          %p194 = pneg %p108
        $region22: #{tpu_custom_call.1} parent=11 // pred_check_branch
          %196 = sbr.rel (%p194) target = $region24
        $region23: #{tpu_custom_call.1} parent=11 // pred_region
          %s198 = ssub.s32 4096, 4096
          %199 = vsyncadd [#allocation9], %s198
          %s200 = sshll.u32 [#allocation8], 4
          %s201 = int_to_ptr.vmem [resolvable:$true] %s200
          %206 = dma.hbm_to_vmem [thread:$0]  %s3, 4096, %s201, [#allocation9], 128, 128, 8
        $region24: #{tpu_custom_call.1} parent=11 // pred_fallthru
          _
        // Predicated region
        $region25: #{tpu_custom_call.1} parent=11 // pred_check
          %p207 = pneg %p129
        $region26: #{tpu_custom_call.1} parent=11 // pred_check_branch
          %209 = sbr.rel (%p207) target = $region28
        $region27: #{tpu_custom_call.1} parent=11 // pred_region
          %s211 = ssub.s32 16, 16
          %212 = vsyncadd [#allocation9], %s211
          %s214 = sshll.u32 [#allocation10], 4
          %s215 = int_to_ptr.vmem [resolvable:$true] %s214
          %217 = dma.hbm_to_vmem [thread:$0]  %s4, 16, %s215, [#allocation9]
        $region28: #{tpu_custom_call.1} parent=11 // pred_fallthru
          _
      $region12: #{tpu_custom_call.1} parent=5 // pred_fallthru
        _
      %p218 = scmp.lt.s32.totalorder %s19, 2
      // Predicated region
      $region29: #{tpu_custom_call.1} parent=5 // pred_check
        %p219 = pneg %p218
      $region30: #{tpu_custom_call.1} parent=5 // pred_check_branch
        %221 = sbr.rel (%p219) target = $region32
      $region31: #{tpu_custom_call.1} parent=5 // pred_region
        // Predicated region
        $region33: #{tpu_custom_call.1} parent=31 // pred_check
          %p222 = pneg %p39
        $region34: #{tpu_custom_call.1} parent=31 // pred_check_branch
          %224 = sbr.rel (%p222) target = $region36
        $region35: #{tpu_custom_call.1} parent=31 // pred_region
          %s225 = sand.u32 %s29, 1
          %s226 = scalar_lea.sflag [#allocation3], %s225
          %s227 = sand.u32 %s29, 1
          %s228 = smul.addr %s227, 1280
          %s229 = scalar_lea.vmem [#allocation2], %s228
          %s230 = smul.u32 10, %s19
          %s232 = ssub.s32 20480, 20480
          %233 = vsyncadd %s226, %s232
          %s234 = smul.addr %s230, 16
          %s235 = smul.addr %s234, 128
          %s236 = scalar_lea.hbm %s0, %s235
          %s237 = sshll.u32 %s229, 4
          %s238 = int_to_ptr.vmem [resolvable:$true] %s237
          %243 = dma.hbm_to_vmem [thread:$0]  %s236, 20480, %s238, %s226, 2048, 2048, 128
        $region36: #{tpu_custom_call.1} parent=31 // pred_fallthru
          _
      $region32: #{tpu_custom_call.1} parent=5 // pred_fallthru
        _
      %p244 = scmp.le.s32.totalorder 1, %s19
      %p245 = scmp.lt.s32.totalorder %s19, 3
      %p246 = pnand %p244, %p245
      %p247 = pneg %p246
      // Predicated region
      $region37: #{tpu_custom_call.1} parent=5 // pred_check
        _
      $region38: #{tpu_custom_call.1} parent=5 // pred_check_branch
        %249 = sbr.rel (%p246) target = $region40
      $region39: #{tpu_custom_call.1} parent=5 // pred_region
        %s250 = ssub.s32 %s19, 1
        %s251 = sand.u32 %s32, 1
        %s252 = scalar_lea.sflag [#allocation3], %s251
        %s253 = sand.u32 %s32, 1
        %s254 = smul.addr %s253, 1280
        %s255 = scalar_lea.vmem [#allocation2], %s254
        // Predicated region
        $region41: #{tpu_custom_call.1} parent=39 // pred_check
          %p256 = pneg %p45
        $region42: #{tpu_custom_call.1} parent=39 // pred_check_branch
          %258 = sbr.rel (%p256) target = $region44
        $region43: #{tpu_custom_call.1} parent=39 // pred_region
          %259 = dma.done %s252, 20480
        $region44: #{tpu_custom_call.1} parent=39 // pred_fallthru
          _
        // Predicated region
        $region45: #{tpu_custom_call.1} parent=39 // pred_check
          %p260 = pneg %p66
        $region46: #{tpu_custom_call.1} parent=39 // pred_check_branch
          %262 = sbr.rel (%p260) target = $region48
        $region47: #{tpu_custom_call.1} parent=39 // pred_region
          %263 = dma.done [#allocation6], 64000
        $region48: #{tpu_custom_call.1} parent=39 // pred_fallthru
          _
        // Predicated region
        $region49: #{tpu_custom_call.1} parent=39 // pred_check
          %p264 = pneg %p87
        $region50: #{tpu_custom_call.1} parent=39 // pred_check_branch
          %266 = sbr.rel (%p264) target = $region52
        $region51: #{tpu_custom_call.1} parent=39 // pred_region
          %267 = dma.done [#allocation6], 32
        $region52: #{tpu_custom_call.1} parent=39 // pred_fallthru
          _
        // Predicated region
        $region53: #{tpu_custom_call.1} parent=39 // pred_check
          %p268 = pneg %p108
        $region54: #{tpu_custom_call.1} parent=39 // pred_check_branch
          %270 = sbr.rel (%p268) target = $region56
        $region55: #{tpu_custom_call.1} parent=39 // pred_region
          %271 = dma.done [#allocation9], 4096
        $region56: #{tpu_custom_call.1} parent=39 // pred_fallthru
          _
        // Predicated region
        $region57: #{tpu_custom_call.1} parent=39 // pred_check
          %p272 = pneg %p129
        $region58: #{tpu_custom_call.1} parent=39 // pred_check_branch
          %274 = sbr.rel (%p272) target = $region60
        $region59: #{tpu_custom_call.1} parent=39 // pred_region
          %275 = dma.done [#allocation9], 16
        $region60: #{tpu_custom_call.1} parent=39 // pred_fallthru
          _
        %s276 = sand.u32 %s32, 1
        %s277 = scalar_lea.sflag [#allocation3], %s276
        %s278 = sand.u32 %s32, 1
        %s279 = smul.addr %s278, 1280
        %s280 = scalar_lea.vmem [#allocation2], %s279
        %p281 = pneg %p45
        %p282 = pneg %p42
        %p283 = pneg %p66
        %p284 = pneg %p63
        %p285 = pneg %p87
        %p286 = pneg %p84
        %p287 = pneg %p108
        %p288 = pneg %p105
        %p289 = pneg %p129
        %p290 = pneg %p126
        %p291 = pneg %p155
        %p292 = pneg %p152
        %s293 = sand.u32 %s142, 1
        %s294 = scalar_lea.sflag [#allocation4], %s293
        %s295 = sand.u32 %s142, 1
        %s296 = smul.addr %s295, 80
        %s297 = scalar_lea.vmem [#allocation11], %s296
        %s298 = smul.u32 10, %s24
        %s299 = smul.u32 10, %s24
        %v300 = vld [vmem:[%s255] sm:$0xff]
        %v301 = vld [vmem:[%s255 + $0x8] sm:$0xff]
        %v302 = vld [vmem:[%s255 + $0x10] sm:$0xff]
        %v303 = vld [vmem:[%s255 + $0x18] sm:$0xff]
        %v304 = vld [vmem:[%s255 + $0x20] sm:$0xff]
        %v305 = vld [vmem:[%s255 + $0x28] sm:$0xff]
        %v306 = vld [vmem:[%s255 + $0x30] sm:$0xff]
        %v307 = vld [vmem:[%s255 + $0x38] sm:$0xff]
        %v308 = vld [vmem:[%s255 + $0x40] sm:$0xff]
        %v309 = vld [vmem:[%s255 + $0x48] sm:$0xff]
        %v310 = vld [vmem:[%s255 + $0x50] sm:$0xff]
        %v311 = vld [vmem:[%s255 + $0x58] sm:$0xff]
        %v312 = vld [vmem:[%s255 + $0x60] sm:$0xff]
        %v313 = vld [vmem:[%s255 + $0x68] sm:$0xff]
        %v314 = vld [vmem:[%s255 + $0x70] sm:$0xff]
        %v315 = vld [vmem:[%s255 + $0x78] sm:$0xff]
        %v316 = vld [vmem:[%s255 + $0x80] sm:$0xff]
        %v317 = vld [vmem:[%s255 + $0x88] sm:$0xff]
        %v318 = vld [vmem:[%s255 + $0x90] sm:$0xff]
        %v319 = vld [vmem:[%s255 + $0x98] sm:$0xff]
        %v320 = vld [vmem:[%s255 + $0xa0] sm:$0xff]
        %v321 = vld [vmem:[%s255 + $0xa8] sm:$0xff]
        %v322 = vld [vmem:[%s255 + $0xb0] sm:$0xff]
        %v323 = vld [vmem:[%s255 + $0xb8] sm:$0xff]
        %v324 = vld [vmem:[%s255 + $0xc0] sm:$0xff]
        %v325 = vld [vmem:[%s255 + $0xc8] sm:$0xff]
        %v326 = vld [vmem:[%s255 + $0xd0] sm:$0xff]
        %v327 = vld [vmem:[%s255 + $0xd8] sm:$0xff]
        %v328 = vld [vmem:[%s255 + $0xe0] sm:$0xff]
        %v329 = vld [vmem:[%s255 + $0xe8] sm:$0xff]
        %v330 = vld [vmem:[%s255 + $0xf0] sm:$0xff]
        %v331 = vld [vmem:[%s255 + $0xf8] sm:$0xff]
        %v332 = vld [vmem:[%s255 + $0x100] sm:$0xff]
        %v333 = vld [vmem:[%s255 + $0x108] sm:$0xff]
        %v334 = vld [vmem:[%s255 + $0x110] sm:$0xff]
        %v335 = vld [vmem:[%s255 + $0x118] sm:$0xff]
        %v336 = vld [vmem:[%s255 + $0x120] sm:$0xff]
        %v337 = vld [vmem:[%s255 + $0x128] sm:$0xff]
        %v338 = vld [vmem:[%s255 + $0x130] sm:$0xff]
        %v339 = vld [vmem:[%s255 + $0x138] sm:$0xff]
        %v340 = vld [vmem:[%s255 + $0x140] sm:$0xff]
        %v341 = vld [vmem:[%s255 + $0x148] sm:$0xff]
        %v342 = vld [vmem:[%s255 + $0x150] sm:$0xff]
        %v343 = vld [vmem:[%s255 + $0x158] sm:$0xff]
        %v344 = vld [vmem:[%s255 + $0x160] sm:$0xff]
        %v345 = vld [vmem:[%s255 + $0x168] sm:$0xff]
        %v346 = vld [vmem:[%s255 + $0x170] sm:$0xff]
        %v347 = vld [vmem:[%s255 + $0x178] sm:$0xff]
        %v348 = vld [vmem:[%s255 + $0x180] sm:$0xff]
        %v349 = vld [vmem:[%s255 + $0x188] sm:$0xff]
        %v350 = vld [vmem:[%s255 + $0x190] sm:$0xff]
        %v351 = vld [vmem:[%s255 + $0x198] sm:$0xff]
        %v352 = vld [vmem:[%s255 + $0x1a0] sm:$0xff]
        %v353 = vld [vmem:[%s255 + $0x1a8] sm:$0xff]
        %v354 = vld [vmem:[%s255 + $0x1b0] sm:$0xff]
        %v355 = vld [vmem:[%s255 + $0x1b8] sm:$0xff]
        %v356 = vld [vmem:[%s255 + $0x1c0] sm:$0xff]
        %v357 = vld [vmem:[%s255 + $0x1c8] sm:$0xff]
        %v358 = vld [vmem:[%s255 + $0x1d0] sm:$0xff]
        %v359 = vld [vmem:[%s255 + $0x1d8] sm:$0xff]
        %v360 = vld [vmem:[%s255 + $0x1e0] sm:$0xff]
        %v361 = vld [vmem:[%s255 + $0x1e8] sm:$0xff]
        %v362 = vld [vmem:[%s255 + $0x1f0] sm:$0xff]
        %v363 = vld [vmem:[%s255 + $0x1f8] sm:$0xff]
        %v364 = vld [vmem:[%s255 + $0x200] sm:$0xff]
        %v365 = vld [vmem:[%s255 + $0x208] sm:$0xff]
        %v366 = vld [vmem:[%s255 + $0x210] sm:$0xff]
        %v367 = vld [vmem:[%s255 + $0x218] sm:$0xff]
        %v368 = vld [vmem:[%s255 + $0x220] sm:$0xff]
        %v369 = vld [vmem:[%s255 + $0x228] sm:$0xff]
        %v370 = vld [vmem:[%s255 + $0x230] sm:$0xff]
        %v371 = vld [vmem:[%s255 + $0x238] sm:$0xff]
        %v372 = vld [vmem:[%s255 + $0x240] sm:$0xff]
        %v373 = vld [vmem:[%s255 + $0x248] sm:$0xff]
        %v374 = vld [vmem:[%s255 + $0x250] sm:$0xff]
        %v375 = vld [vmem:[%s255 + $0x258] sm:$0xff]
        %v376 = vld [vmem:[%s255 + $0x260] sm:$0xff]
        %v377 = vld [vmem:[%s255 + $0x268] sm:$0xff]
        %v378 = vld [vmem:[%s255 + $0x270] sm:$0xff]
        %v379 = vld [vmem:[%s255 + $0x278] sm:$0xff]
        %v380 = vld [vmem:[%s255 + $0x280] sm:$0xff]
        %v381 = vld [vmem:[%s255 + $0x288] sm:$0xff]
        %v382 = vld [vmem:[%s255 + $0x290] sm:$0xff]
        %v383 = vld [vmem:[%s255 + $0x298] sm:$0xff]
        %v384 = vld [vmem:[%s255 + $0x2a0] sm:$0xff]
        %v385 = vld [vmem:[%s255 + $0x2a8] sm:$0xff]
        %v386 = vld [vmem:[%s255 + $0x2b0] sm:$0xff]
        %v387 = vld [vmem:[%s255 + $0x2b8] sm:$0xff]
        %v388 = vld [vmem:[%s255 + $0x2c0] sm:$0xff]
        %v389 = vld [vmem:[%s255 + $0x2c8] sm:$0xff]
        %v390 = vld [vmem:[%s255 + $0x2d0] sm:$0xff]
        %v391 = vld [vmem:[%s255 + $0x2d8] sm:$0xff]
        %v392 = vld [vmem:[%s255 + $0x2e0] sm:$0xff]
        %v393 = vld [vmem:[%s255 + $0x2e8] sm:$0xff]
        %v394 = vld [vmem:[%s255 + $0x2f0] sm:$0xff]
        %v395 = vld [vmem:[%s255 + $0x2f8] sm:$0xff]
        %v396 = vld [vmem:[%s255 + $0x300] sm:$0xff]
        %v397 = vld [vmem:[%s255 + $0x308] sm:$0xff]
        %v398 = vld [vmem:[%s255 + $0x310] sm:$0xff]
        %v399 = vld [vmem:[%s255 + $0x318] sm:$0xff]
        %v400 = vld [vmem:[%s255 + $0x320] sm:$0xff]
        %v401 = vld [vmem:[%s255 + $0x328] sm:$0xff]
        %v402 = vld [vmem:[%s255 + $0x330] sm:$0xff]
        %v403 = vld [vmem:[%s255 + $0x338] sm:$0xff]
        %v404 = vld [vmem:[%s255 + $0x340] sm:$0xff]
        %v405 = vld [vmem:[%s255 + $0x348] sm:$0xff]
        %v406 = vld [vmem:[%s255 + $0x350] sm:$0xff]
        %v407 = vld [vmem:[%s255 + $0x358] sm:$0xff]
        %v408 = vld [vmem:[%s255 + $0x360] sm:$0xff]
        %v409 = vld [vmem:[%s255 + $0x368] sm:$0xff]
        %v410 = vld [vmem:[%s255 + $0x370] sm:$0xff]
        %v411 = vld [vmem:[%s255 + $0x378] sm:$0xff]
        %v412 = vld [vmem:[%s255 + $0x380] sm:$0xff]
        %v413 = vld [vmem:[%s255 + $0x388] sm:$0xff]
        %v414 = vld [vmem:[%s255 + $0x390] sm:$0xff]
        %v415 = vld [vmem:[%s255 + $0x398] sm:$0xff]
        %v416 = vld [vmem:[%s255 + $0x3a0] sm:$0xff]
        %v417 = vld [vmem:[%s255 + $0x3a8] sm:$0xff]
        %v418 = vld [vmem:[%s255 + $0x3b0] sm:$0xff]
        %v419 = vld [vmem:[%s255 + $0x3b8] sm:$0xff]
        %v420 = vld [vmem:[%s255 + $0x3c0] sm:$0xff]
        %v421 = vld [vmem:[%s255 + $0x3c8] sm:$0xff]
        %v422 = vld [vmem:[%s255 + $0x3d0] sm:$0xff]
        %v423 = vld [vmem:[%s255 + $0x3d8] sm:$0xff]
        %v424 = vld [vmem:[%s255 + $0x3e0] sm:$0xff]
        %v425 = vld [vmem:[%s255 + $0x3e8] sm:$0xff]
        %v426 = vld [vmem:[%s255 + $0x3f0] sm:$0xff]
        %v427 = vld [vmem:[%s255 + $0x3f8] sm:$0xff]
        %v428 = vld [vmem:[%s255 + $0x400] sm:$0xff]
        %v429 = vld [vmem:[%s255 + $0x408] sm:$0xff]
        %v430 = vld [vmem:[%s255 + $0x410] sm:$0xff]
        %v431 = vld [vmem:[%s255 + $0x418] sm:$0xff]
        %v432 = vld [vmem:[%s255 + $0x420] sm:$0xff]
        %v433 = vld [vmem:[%s255 + $0x428] sm:$0xff]
        %v434 = vld [vmem:[%s255 + $0x430] sm:$0xff]
        %v435 = vld [vmem:[%s255 + $0x438] sm:$0xff]
        %v436 = vld [vmem:[%s255 + $0x440] sm:$0xff]
        %v437 = vld [vmem:[%s255 + $0x448] sm:$0xff]
        %v438 = vld [vmem:[%s255 + $0x450] sm:$0xff]
        %v439 = vld [vmem:[%s255 + $0x458] sm:$0xff]
        %v440 = vld [vmem:[%s255 + $0x460] sm:$0xff]
        %v441 = vld [vmem:[%s255 + $0x468] sm:$0xff]
        %v442 = vld [vmem:[%s255 + $0x470] sm:$0xff]
        %v443 = vld [vmem:[%s255 + $0x478] sm:$0xff]
        %v444 = vld [vmem:[%s255 + $0x480] sm:$0xff]
        %v445 = vld [vmem:[%s255 + $0x488] sm:$0xff]
        %v446 = vld [vmem:[%s255 + $0x490] sm:$0xff]
        %v447 = vld [vmem:[%s255 + $0x498] sm:$0xff]
        %v448 = vld [vmem:[%s255 + $0x4a0] sm:$0xff]
        %v449 = vld [vmem:[%s255 + $0x4a8] sm:$0xff]
        %v450 = vld [vmem:[%s255 + $0x4b0] sm:$0xff]
        %v451 = vld [vmem:[%s255 + $0x4b8] sm:$0xff]
        %v452 = vld [vmem:[%s255 + $0x4c0] sm:$0xff]
        %v453 = vld [vmem:[%s255 + $0x4c8] sm:$0xff]
        %v454 = vld [vmem:[%s255 + $0x4d0] sm:$0xff]
        %v455 = vld [vmem:[%s255 + $0x4d8] sm:$0xff]
        %v456 = vld [vmem:[%s255 + $0x4e0] sm:$0xff]
        %v457 = vld [vmem:[%s255 + $0x4e8] sm:$0xff]
        %v458 = vld [vmem:[%s255 + $0x4f0] sm:$0xff]
        %v459 = vld [vmem:[%s255 + $0x4f8] sm:$0xff]
        %v460 = vld [vmem:[#allocation5] sm:$0xff]
        %v461 = vld [vmem:[#allocation5 + $0x8] sm:$0xff]
        %v462 = vld [vmem:[#allocation5 + $0x10] sm:$0xff]
        %v463 = vld [vmem:[#allocation5 + $0x18] sm:$0xff]
        %v464 = vld [vmem:[#allocation5 + $0x20] sm:$0xff]
        %v465 = vld [vmem:[#allocation5 + $0x28] sm:$0xff]
        %v466 = vld [vmem:[#allocation5 + $0x30] sm:$0xff]
        %v467 = vld [vmem:[#allocation5 + $0x38] sm:$0xff]
        %v468 = vld [vmem:[#allocation5 + $0x40] sm:$0xff]
        %v469 = vld [vmem:[#allocation5 + $0x48] sm:$0xff]
        %v470 = vld [vmem:[#allocation5 + $0x50] sm:$0xff]
        %v471 = vld [vmem:[#allocation5 + $0x58] sm:$0xff]
        %v472 = vld [vmem:[#allocation5 + $0x60] sm:$0xff]
        %v473 = vld [vmem:[#allocation5 + $0x68] sm:$0xff]
        %v474 = vld [vmem:[#allocation5 + $0x70] sm:$0xff]
        %v475 = vld [vmem:[#allocation5 + $0x78] sm:$0xff]
        %v476 = vld [vmem:[#allocation5 + $0x80] sm:$0xff]
        %v477 = vld [vmem:[#allocation5 + $0x88] sm:$0xff]
        %v478 = vld [vmem:[#allocation5 + $0x90] sm:$0xff]
        %v479 = vld [vmem:[#allocation5 + $0x98] sm:$0xff]
        %v480 = vld [vmem:[#allocation5 + $0xa0] sm:$0xff]
        %v481 = vld [vmem:[#allocation5 + $0xa8] sm:$0xff]
        %v482 = vld [vmem:[#allocation5 + $0xb0] sm:$0xff]
        %v483 = vld [vmem:[#allocation5 + $0xb8] sm:$0xff]
        %v484 = vld [vmem:[#allocation5 + $0xc0] sm:$0xff]
        %v485 = vld [vmem:[#allocation5 + $0xc8] sm:$0xff]
        %v486 = vld [vmem:[#allocation5 + $0xd0] sm:$0xff]
        %v487 = vld [vmem:[#allocation5 + $0xd8] sm:$0xff]
        %v488 = vld [vmem:[#allocation5 + $0xe0] sm:$0xff]
        %v489 = vld [vmem:[#allocation5 + $0xe8] sm:$0xff]
        %v490 = vld [vmem:[#allocation5 + $0xf0] sm:$0xff]
        %v491 = vld [vmem:[#allocation5 + $0xf8] sm:$0xff]
        %v492 = vld [vmem:[#allocation5 + $0x100] sm:$0xff]
        %v493 = vld [vmem:[#allocation5 + $0x108] sm:$0xff]
        %v494 = vld [vmem:[#allocation5 + $0x110] sm:$0xff]
        %v495 = vld [vmem:[#allocation5 + $0x118] sm:$0xff]
        %v496 = vld [vmem:[#allocation5 + $0x120] sm:$0xff]
        %v497 = vld [vmem:[#allocation5 + $0x128] sm:$0xff]
        %v498 = vld [vmem:[#allocation5 + $0x130] sm:$0xff]
        %v499 = vld [vmem:[#allocation5 + $0x138] sm:$0xff]
        %v500 = vld [vmem:[#allocation5 + $0x140] sm:$0xff]
        %v501 = vld [vmem:[#allocation5 + $0x148] sm:$0xff]
        %v502 = vld [vmem:[#allocation5 + $0x150] sm:$0xff]
        %v503 = vld [vmem:[#allocation5 + $0x158] sm:$0xff]
        %v504 = vld [vmem:[#allocation5 + $0x160] sm:$0xff]
        %v505 = vld [vmem:[#allocation5 + $0x168] sm:$0xff]
        %v506 = vld [vmem:[#allocation5 + $0x170] sm:$0xff]
        %v507 = vld [vmem:[#allocation5 + $0x178] sm:$0xff]
        %v508 = vld [vmem:[#allocation5 + $0x180] sm:$0xff]
        %v509 = vld [vmem:[#allocation5 + $0x188] sm:$0xff]
        %v510 = vld [vmem:[#allocation5 + $0x190] sm:$0xff]
        %v511 = vld [vmem:[#allocation5 + $0x198] sm:$0xff]
        %v512 = vld [vmem:[#allocation5 + $0x1a0] sm:$0xff]
        %v513 = vld [vmem:[#allocation5 + $0x1a8] sm:$0xff]
        %v514 = vld [vmem:[#allocation5 + $0x1b0] sm:$0xff]
        %v515 = vld [vmem:[#allocation5 + $0x1b8] sm:$0xff]
        %v516 = vld [vmem:[#allocation5 + $0x1c0] sm:$0xff]
        %v517 = vld [vmem:[#allocation5 + $0x1c8] sm:$0xff]
        %v518 = vld [vmem:[#allocation5 + $0x1d0] sm:$0xff]
        %v519 = vld [vmem:[#allocation5 + $0x1d8] sm:$0xff]
        %v520 = vld [vmem:[#allocation5 + $0x1e0] sm:$0xff]
        %v521 = vld [vmem:[#allocation5 + $0x1e8] sm:$0xff]
        %v522 = vld [vmem:[#allocation5 + $0x1f0] sm:$0xff]
        %v523 = vld [vmem:[#allocation5 + $0x1f8] sm:$0xff]
        %v524 = vld [vmem:[#allocation5 + $0x200] sm:$0xff]
        %v525 = vld [vmem:[#allocation5 + $0x208] sm:$0xff]
        %v526 = vld [vmem:[#allocation5 + $0x210] sm:$0xff]
        %v527 = vld [vmem:[#allocation5 + $0x218] sm:$0xff]
        %v528 = vld [vmem:[#allocation5 + $0x220] sm:$0xff]
        %v529 = vld [vmem:[#allocation5 + $0x228] sm:$0xff]
        %v530 = vld [vmem:[#allocation5 + $0x230] sm:$0xff]
        %v531 = vld [vmem:[#allocation5 + $0x238] sm:$0xff]
        %v532 = vld [vmem:[#allocation5 + $0x240] sm:$0xff]
        %v533 = vld [vmem:[#allocation5 + $0x248] sm:$0xff]
        %v534 = vld [vmem:[#allocation5 + $0x250] sm:$0xff]
        %v535 = vld [vmem:[#allocation5 + $0x258] sm:$0xff]
        %v536 = vld [vmem:[#allocation5 + $0x260] sm:$0xff]
        %v537 = vld [vmem:[#allocation5 + $0x268] sm:$0xff]
        %v538 = vld [vmem:[#allocation5 + $0x270] sm:$0xff]
        %v539 = vld [vmem:[#allocation5 + $0x278] sm:$0xff]
        %v540 = vld [vmem:[#allocation5 + $0x280] sm:$0xff]
        %v541 = vld [vmem:[#allocation5 + $0x288] sm:$0xff]
        %v542 = vld [vmem:[#allocation5 + $0x290] sm:$0xff]
        %v543 = vld [vmem:[#allocation5 + $0x298] sm:$0xff]
        %v544 = vld [vmem:[#allocation5 + $0x2a0] sm:$0xff]
        %v545 = vld [vmem:[#allocation5 + $0x2a8] sm:$0xff]
        %v546 = vld [vmem:[#allocation5 + $0x2b0] sm:$0xff]
        %v547 = vld [vmem:[#allocation5 + $0x2b8] sm:$0xff]
        %v548 = vld [vmem:[#allocation5 + $0x2c0] sm:$0xff]
        %v549 = vld [vmem:[#allocation5 + $0x2c8] sm:$0xff]
        %v550 = vld [vmem:[#allocation5 + $0x2d0] sm:$0xff]
        %v551 = vld [vmem:[#allocation5 + $0x2d8] sm:$0xff]
        %v552 = vld [vmem:[#allocation5 + $0x2e0] sm:$0xff]
        %v553 = vld [vmem:[#allocation5 + $0x2e8] sm:$0xff]
        %v554 = vld [vmem:[#allocation5 + $0x2f0] sm:$0xff]
        %v555 = vld [vmem:[#allocation5 + $0x2f8] sm:$0xff]
        %v556 = vld [vmem:[#allocation5 + $0x300] sm:$0xff]
        %v557 = vld [vmem:[#allocation5 + $0x308] sm:$0xff]
        %v558 = vld [vmem:[#allocation5 + $0x310] sm:$0xff]
        %v559 = vld [vmem:[#allocation5 + $0x318] sm:$0xff]
        %v560 = vld [vmem:[#allocation5 + $0x320] sm:$0xff]
        %v561 = vld [vmem:[#allocation5 + $0x328] sm:$0xff]
        %v562 = vld [vmem:[#allocation5 + $0x330] sm:$0xff]
        %v563 = vld [vmem:[#allocation5 + $0x338] sm:$0xff]
        %v564 = vld [vmem:[#allocation5 + $0x340] sm:$0xff]
        %v565 = vld [vmem:[#allocation5 + $0x348] sm:$0xff]
        %v566 = vld [vmem:[#allocation5 + $0x350] sm:$0xff]
        %v567 = vld [vmem:[#allocation5 + $0x358] sm:$0xff]
        %v568 = vld [vmem:[#allocation5 + $0x360] sm:$0xff]
        %v569 = vld [vmem:[#allocation5 + $0x368] sm:$0xff]
        %v570 = vld [vmem:[#allocation5 + $0x370] sm:$0xff]
        %v571 = vld [vmem:[#allocation5 + $0x378] sm:$0xff]
        %v572 = vld [vmem:[#allocation5 + $0x380] sm:$0xff]
        %v573 = vld [vmem:[#allocation5 + $0x388] sm:$0xff]
        %v574 = vld [vmem:[#allocation5 + $0x390] sm:$0xff]
        %v575 = vld [vmem:[#allocation5 + $0x398] sm:$0xff]
        %v576 = vld [vmem:[#allocation5 + $0x3a0] sm:$0xff]
        %v577 = vld [vmem:[#allocation5 + $0x3a8] sm:$0xff]
        %v578 = vld [vmem:[#allocation5 + $0x3b0] sm:$0xff]
        %v579 = vld [vmem:[#allocation5 + $0x3b8] sm:$0xff]
        %v580 = vld [vmem:[#allocation5 + $0x3c0] sm:$0xff]
        %v581 = vld [vmem:[#allocation5 + $0x3c8] sm:$0xff]
        %v582 = vld [vmem:[#allocation5 + $0x3d0] sm:$0xff]
        %v583 = vld [vmem:[#allocation5 + $0x3d8] sm:$0xff]
        %v584 = vld [vmem:[#allocation5 + $0x3e0] sm:$0xff]
        %v585 = vld [vmem:[#allocation5 + $0x3e8] sm:$0xff]
        %v586 = vld [vmem:[#allocation5 + $0x3f0] sm:$0xff]
        %v587 = vld [vmem:[#allocation5 + $0x3f8] sm:$0xff]
        %v588 = vld [vmem:[#allocation5 + $0x400] sm:$0xff]
        %v589 = vld [vmem:[#allocation5 + $0x408] sm:$0xff]
        %v590 = vld [vmem:[#allocation5 + $0x410] sm:$0xff]
        %v591 = vld [vmem:[#allocation5 + $0x418] sm:$0xff]
        %v592 = vld [vmem:[#allocation5 + $0x420] sm:$0xff]
        %v593 = vld [vmem:[#allocation5 + $0x428] sm:$0xff]
        %v594 = vld [vmem:[#allocation5 + $0x430] sm:$0xff]
        %v595 = vld [vmem:[#allocation5 + $0x438] sm:$0xff]
        %v596 = vld [vmem:[#allocation5 + $0x440] sm:$0xff]
        %v597 = vld [vmem:[#allocation5 + $0x448] sm:$0xff]
        %v598 = vld [vmem:[#allocation5 + $0x450] sm:$0xff]
        %v599 = vld [vmem:[#allocation5 + $0x458] sm:$0xff]
        %v600 = vld [vmem:[#allocation5 + $0x460] sm:$0xff]
        %v601 = vld [vmem:[#allocation5 + $0x468] sm:$0xff]
        %v602 = vld [vmem:[#allocation5 + $0x470] sm:$0xff]
        %v603 = vld [vmem:[#allocation5 + $0x478] sm:$0xff]
        %v604 = vld [vmem:[#allocation5 + $0x480] sm:$0xff]
        %v605 = vld [vmem:[#allocation5 + $0x488] sm:$0xff]
        %v606 = vld [vmem:[#allocation5 + $0x490] sm:$0xff]
        %v607 = vld [vmem:[#allocation5 + $0x498] sm:$0xff]
        %v608 = vld [vmem:[#allocation5 + $0x4a0] sm:$0xff]
        %v609 = vld [vmem:[#allocation5 + $0x4a8] sm:$0xff]
        %v610 = vld [vmem:[#allocation5 + $0x4b0] sm:$0xff]
        %v611 = vld [vmem:[#allocation5 + $0x4b8] sm:$0xff]
        %v612 = vld [vmem:[#allocation5 + $0x4c0] sm:$0xff]
        %v613 = vld [vmem:[#allocation5 + $0x4c8] sm:$0xff]
        %v614 = vld [vmem:[#allocation5 + $0x4d0] sm:$0xff]
        %v615 = vld [vmem:[#allocation5 + $0x4d8] sm:$0xff]
        %v616 = vld [vmem:[#allocation5 + $0x4e0] sm:$0xff]
        %v617 = vld [vmem:[#allocation5 + $0x4e8] sm:$0xff]
        %v618 = vld [vmem:[#allocation5 + $0x4f0] sm:$0xff]
        %v619 = vld [vmem:[#allocation5 + $0x4f8] sm:$0xff]
        %v620 = vld [vmem:[#allocation5 + $0x500] sm:$0xff]
        %v621 = vld [vmem:[#allocation5 + $0x508] sm:$0xff]
        %v622 = vld [vmem:[#allocation5 + $0x510] sm:$0xff]
        %v623 = vld [vmem:[#allocation5 + $0x518] sm:$0xff]
        %v624 = vld [vmem:[#allocation5 + $0x520] sm:$0xff]
        %v625 = vld [vmem:[#allocation5 + $0x528] sm:$0xff]
        %v626 = vld [vmem:[#allocation5 + $0x530] sm:$0xff]
        %v627 = vld [vmem:[#allocation5 + $0x538] sm:$0xff]
        %v628 = vld [vmem:[#allocation5 + $0x540] sm:$0xff]
        %v629 = vld [vmem:[#allocation5 + $0x548] sm:$0xff]
        %v630 = vld [vmem:[#allocation5 + $0x550] sm:$0xff]
        %v631 = vld [vmem:[#allocation5 + $0x558] sm:$0xff]
        %v632 = vld [vmem:[#allocation5 + $0x560] sm:$0xff]
        %v633 = vld [vmem:[#allocation5 + $0x568] sm:$0xff]
        %v634 = vld [vmem:[#allocation5 + $0x570] sm:$0xff]
        %v635 = vld [vmem:[#allocation5 + $0x578] sm:$0xff]
        %v636 = vld [vmem:[#allocation5 + $0x580] sm:$0xff]
        %v637 = vld [vmem:[#allocation5 + $0x588] sm:$0xff]
        %v638 = vld [vmem:[#allocation5 + $0x590] sm:$0xff]
        %v639 = vld [vmem:[#allocation5 + $0x598] sm:$0xff]
        %v640 = vld [vmem:[#allocation5 + $0x5a0] sm:$0xff]
        %v641 = vld [vmem:[#allocation5 + $0x5a8] sm:$0xff]
        %v642 = vld [vmem:[#allocation5 + $0x5b0] sm:$0xff]
        %v643 = vld [vmem:[#allocation5 + $0x5b8] sm:$0xff]
        %v644 = vld [vmem:[#allocation5 + $0x5c0] sm:$0xff]
        %v645 = vld [vmem:[#allocation5 + $0x5c8] sm:$0xff]
        %v646 = vld [vmem:[#allocation5 + $0x5d0] sm:$0xff]
        %v647 = vld [vmem:[#allocation5 + $0x5d8] sm:$0xff]
        %v648 = vld [vmem:[#allocation5 + $0x5e0] sm:$0xff]
        %v649 = vld [vmem:[#allocation5 + $0x5e8] sm:$0xff]
        %v650 = vld [vmem:[#allocation5 + $0x5f0] sm:$0xff]
        %v651 = vld [vmem:[#allocation5 + $0x5f8] sm:$0xff]
        %v652 = vld [vmem:[#allocation5 + $0x600] sm:$0xff]
        %v653 = vld [vmem:[#allocation5 + $0x608] sm:$0xff]
        %v654 = vld [vmem:[#allocation5 + $0x610] sm:$0xff]
        %v655 = vld [vmem:[#allocation5 + $0x618] sm:$0xff]
        %v656 = vld [vmem:[#allocation5 + $0x620] sm:$0xff]
        %v657 = vld [vmem:[#allocation5 + $0x628] sm:$0xff]
        %v658 = vld [vmem:[#allocation5 + $0x630] sm:$0xff]
        %v659 = vld [vmem:[#allocation5 + $0x638] sm:$0xff]
        %v660 = vld [vmem:[#allocation5 + $0x640] sm:$0xff]
        %v661 = vld [vmem:[#allocation5 + $0x648] sm:$0xff]
        %v662 = vld [vmem:[#allocation5 + $0x650] sm:$0xff]
        %v663 = vld [vmem:[#allocation5 + $0x658] sm:$0xff]
        %v664 = vld [vmem:[#allocation5 + $0x660] sm:$0xff]
        %v665 = vld [vmem:[#allocation5 + $0x668] sm:$0xff]
        %v666 = vld [vmem:[#allocation5 + $0x670] sm:$0xff]
        %v667 = vld [vmem:[#allocation5 + $0x678] sm:$0xff]
        %v668 = vld [vmem:[#allocation5 + $0x680] sm:$0xff]
        %v669 = vld [vmem:[#allocation5 + $0x688] sm:$0xff]
        %v670 = vld [vmem:[#allocation5 + $0x690] sm:$0xff]
        %v671 = vld [vmem:[#allocation5 + $0x698] sm:$0xff]
        %v672 = vld [vmem:[#allocation5 + $0x6a0] sm:$0xff]
        %v673 = vld [vmem:[#allocation5 + $0x6a8] sm:$0xff]
        %v674 = vld [vmem:[#allocation5 + $0x6b0] sm:$0xff]
        %v675 = vld [vmem:[#allocation5 + $0x6b8] sm:$0xff]
        %v676 = vld [vmem:[#allocation5 + $0x6c0] sm:$0xff]
        %v677 = vld [vmem:[#allocation5 + $0x6c8] sm:$0xff]
        %v678 = vld [vmem:[#allocation5 + $0x6d0] sm:$0xff]
        %v679 = vld [vmem:[#allocation5 + $0x6d8] sm:$0xff]
        %v680 = vld [vmem:[#allocation5 + $0x6e0] sm:$0xff]
        %v681 = vld [vmem:[#allocation5 + $0x6e8] sm:$0xff]
        %v682 = vld [vmem:[#allocation5 + $0x6f0] sm:$0xff]
        %v683 = vld [vmem:[#allocation5 + $0x6f8] sm:$0xff]
        %v684 = vld [vmem:[#allocation5 + $0x700] sm:$0xff]
        %v685 = vld [vmem:[#allocation5 + $0x708] sm:$0xff]
        %v686 = vld [vmem:[#allocation5 + $0x710] sm:$0xff]
        %v687 = vld [vmem:[#allocation5 + $0x718] sm:$0xff]
        %v688 = vld [vmem:[#allocation5 + $0x720] sm:$0xff]
        %v689 = vld [vmem:[#allocation5 + $0x728] sm:$0xff]
        %v690 = vld [vmem:[#allocation5 + $0x730] sm:$0xff]
        %v691 = vld [vmem:[#allocation5 + $0x738] sm:$0xff]
        %v692 = vld [vmem:[#allocation5 + $0x740] sm:$0xff]
        %v693 = vld [vmem:[#allocation5 + $0x748] sm:$0xff]
        %v694 = vld [vmem:[#allocation5 + $0x750] sm:$0xff]
        %v695 = vld [vmem:[#allocation5 + $0x758] sm:$0xff]
        %v696 = vld [vmem:[#allocation5 + $0x760] sm:$0xff]
        %v697 = vld [vmem:[#allocation5 + $0x768] sm:$0xff]
        %v698 = vld [vmem:[#allocation5 + $0x770] sm:$0xff]
        %v699 = vld [vmem:[#allocation5 + $0x778] sm:$0xff]
        %v700 = vld [vmem:[#allocation5 + $0x780] sm:$0xff]
        %v701 = vld [vmem:[#allocation5 + $0x788] sm:$0xff]
        %v702 = vld [vmem:[#allocation5 + $0x790] sm:$0xff]
        %v703 = vld [vmem:[#allocation5 + $0x798] sm:$0xff]
        %v704 = vld [vmem:[#allocation5 + $0x7a0] sm:$0xff]
        %v705 = vld [vmem:[#allocation5 + $0x7a8] sm:$0xff]
        %v706 = vld [vmem:[#allocation5 + $0x7b0] sm:$0xff]
        %v707 = vld [vmem:[#allocation5 + $0x7b8] sm:$0xff]
        %v708 = vld [vmem:[#allocation5 + $0x7c0] sm:$0xff]
        %v709 = vld [vmem:[#allocation5 + $0x7c8] sm:$0xff]
        %v710 = vld [vmem:[#allocation5 + $0x7d0] sm:$0xff]
        %v711 = vld [vmem:[#allocation5 + $0x7d8] sm:$0xff]
        %v712 = vld [vmem:[#allocation5 + $0x7e0] sm:$0xff]
        %v713 = vld [vmem:[#allocation5 + $0x7e8] sm:$0xff]
        %v714 = vld [vmem:[#allocation5 + $0x7f0] sm:$0xff]
        %v715 = vld [vmem:[#allocation5 + $0x7f8] sm:$0xff]
        %v716 = vld [vmem:[#allocation5 + $0x800] sm:$0xff]
        %v717 = vld [vmem:[#allocation5 + $0x808] sm:$0xff]
        %v718 = vld [vmem:[#allocation5 + $0x810] sm:$0xff]
        %v719 = vld [vmem:[#allocation5 + $0x818] sm:$0xff]
        %v720 = vld [vmem:[#allocation5 + $0x820] sm:$0xff]
        %v721 = vld [vmem:[#allocation5 + $0x828] sm:$0xff]
        %v722 = vld [vmem:[#allocation5 + $0x830] sm:$0xff]
        %v723 = vld [vmem:[#allocation5 + $0x838] sm:$0xff]
        %v724 = vld [vmem:[#allocation5 + $0x840] sm:$0xff]
        %v725 = vld [vmem:[#allocation5 + $0x848] sm:$0xff]
        %v726 = vld [vmem:[#allocation5 + $0x850] sm:$0xff]
        %v727 = vld [vmem:[#allocation5 + $0x858] sm:$0xff]
        %v728 = vld [vmem:[#allocation5 + $0x860] sm:$0xff]
        %v729 = vld [vmem:[#allocation5 + $0x868] sm:$0xff]
        %v730 = vld [vmem:[#allocation5 + $0x870] sm:$0xff]
        %v731 = vld [vmem:[#allocation5 + $0x878] sm:$0xff]
        %v732 = vld [vmem:[#allocation5 + $0x880] sm:$0xff]
        %v733 = vld [vmem:[#allocation5 + $0x888] sm:$0xff]
        %v734 = vld [vmem:[#allocation5 + $0x890] sm:$0xff]
        %v735 = vld [vmem:[#allocation5 + $0x898] sm:$0xff]
        %v736 = vld [vmem:[#allocation5 + $0x8a0] sm:$0xff]
        %v737 = vld [vmem:[#allocation5 + $0x8a8] sm:$0xff]
        %v738 = vld [vmem:[#allocation5 + $0x8b0] sm:$0xff]
        %v739 = vld [vmem:[#allocation5 + $0x8b8] sm:$0xff]
        %v740 = vld [vmem:[#allocation5 + $0x8c0] sm:$0xff]
        %v741 = vld [vmem:[#allocation5 + $0x8c8] sm:$0xff]
        %v742 = vld [vmem:[#allocation5 + $0x8d0] sm:$0xff]
        %v743 = vld [vmem:[#allocation5 + $0x8d8] sm:$0xff]
        %v744 = vld [vmem:[#allocation5 + $0x8e0] sm:$0xff]
        %v745 = vld [vmem:[#allocation5 + $0x8e8] sm:$0xff]
        %v746 = vld [vmem:[#allocation5 + $0x8f0] sm:$0xff]
        %v747 = vld [vmem:[#allocation5 + $0x8f8] sm:$0xff]
        %v748 = vld [vmem:[#allocation5 + $0x900] sm:$0xff]
        %v749 = vld [vmem:[#allocation5 + $0x908] sm:$0xff]
        %v750 = vld [vmem:[#allocation5 + $0x910] sm:$0xff]
        %v751 = vld [vmem:[#allocation5 + $0x918] sm:$0xff]
        %v752 = vld [vmem:[#allocation5 + $0x920] sm:$0xff]
        %v753 = vld [vmem:[#allocation5 + $0x928] sm:$0xff]
        %v754 = vld [vmem:[#allocation5 + $0x930] sm:$0xff]
        %v755 = vld [vmem:[#allocation5 + $0x938] sm:$0xff]
        %v756 = vld [vmem:[#allocation5 + $0x940] sm:$0xff]
        %v757 = vld [vmem:[#allocation5 + $0x948] sm:$0xff]
        %v758 = vld [vmem:[#allocation5 + $0x950] sm:$0xff]
        %v759 = vld [vmem:[#allocation5 + $0x958] sm:$0xff]
        %v760 = vld [vmem:[#allocation5 + $0x960] sm:$0xff]
        %v761 = vld [vmem:[#allocation5 + $0x968] sm:$0xff]
        %v762 = vld [vmem:[#allocation5 + $0x970] sm:$0xff]
        %v763 = vld [vmem:[#allocation5 + $0x978] sm:$0xff]
        %v764 = vld [vmem:[#allocation5 + $0x980] sm:$0xff]
        %v765 = vld [vmem:[#allocation5 + $0x988] sm:$0xff]
        %v766 = vld [vmem:[#allocation5 + $0x990] sm:$0xff]
        %v767 = vld [vmem:[#allocation5 + $0x998] sm:$0xff]
        %v768 = vld [vmem:[#allocation5 + $0x9a0] sm:$0xff]
        %v769 = vld [vmem:[#allocation5 + $0x9a8] sm:$0xff]
        %v770 = vld [vmem:[#allocation5 + $0x9b0] sm:$0xff]
        %v771 = vld [vmem:[#allocation5 + $0x9b8] sm:$0xff]
        %v772 = vld [vmem:[#allocation5 + $0x9c0] sm:$0xff]
        %v773 = vld [vmem:[#allocation5 + $0x9c8] sm:$0xff]
        %v774 = vld [vmem:[#allocation5 + $0x9d0] sm:$0xff]
        %v775 = vld [vmem:[#allocation5 + $0x9d8] sm:$0xff]
        %v776 = vld [vmem:[#allocation5 + $0x9e0] sm:$0xff]
        %v777 = vld [vmem:[#allocation5 + $0x9e8] sm:$0xff]
        %v778 = vld [vmem:[#allocation5 + $0x9f0] sm:$0xff]
        %v779 = vld [vmem:[#allocation5 + $0x9f8] sm:$0xff]
        %v780 = vld [vmem:[#allocation5 + $0xa00] sm:$0xff]
        %v781 = vld [vmem:[#allocation5 + $0xa08] sm:$0xff]
        %v782 = vld [vmem:[#allocation5 + $0xa10] sm:$0xff]
        %v783 = vld [vmem:[#allocation5 + $0xa18] sm:$0xff]
        %v784 = vld [vmem:[#allocation5 + $0xa20] sm:$0xff]
        %v785 = vld [vmem:[#allocation5 + $0xa28] sm:$0xff]
        %v786 = vld [vmem:[#allocation5 + $0xa30] sm:$0xff]
        %v787 = vld [vmem:[#allocation5 + $0xa38] sm:$0xff]
        %v788 = vld [vmem:[#allocation5 + $0xa40] sm:$0xff]
        %v789 = vld [vmem:[#allocation5 + $0xa48] sm:$0xff]
        %v790 = vld [vmem:[#allocation5 + $0xa50] sm:$0xff]
        %v791 = vld [vmem:[#allocation5 + $0xa58] sm:$0xff]
        %v792 = vld [vmem:[#allocation5 + $0xa60] sm:$0xff]
        %v793 = vld [vmem:[#allocation5 + $0xa68] sm:$0xff]
        %v794 = vld [vmem:[#allocation5 + $0xa70] sm:$0xff]
        %v795 = vld [vmem:[#allocation5 + $0xa78] sm:$0xff]
        %v796 = vld [vmem:[#allocation5 + $0xa80] sm:$0xff]
        %v797 = vld [vmem:[#allocation5 + $0xa88] sm:$0xff]
        %v798 = vld [vmem:[#allocation5 + $0xa90] sm:$0xff]
        %v799 = vld [vmem:[#allocation5 + $0xa98] sm:$0xff]
        %v800 = vld [vmem:[#allocation5 + $0xaa0] sm:$0xff]
        %v801 = vld [vmem:[#allocation5 + $0xaa8] sm:$0xff]
        %v802 = vld [vmem:[#allocation5 + $0xab0] sm:$0xff]
        %v803 = vld [vmem:[#allocation5 + $0xab8] sm:$0xff]
        %v804 = vld [vmem:[#allocation5 + $0xac0] sm:$0xff]
        %v805 = vld [vmem:[#allocation5 + $0xac8] sm:$0xff]
        %v806 = vld [vmem:[#allocation5 + $0xad0] sm:$0xff]
        %v807 = vld [vmem:[#allocation5 + $0xad8] sm:$0xff]
        %v808 = vld [vmem:[#allocation5 + $0xae0] sm:$0xff]
        %v809 = vld [vmem:[#allocation5 + $0xae8] sm:$0xff]
        %v810 = vld [vmem:[#allocation5 + $0xaf0] sm:$0xff]
        %v811 = vld [vmem:[#allocation5 + $0xaf8] sm:$0xff]
        %v812 = vld [vmem:[#allocation5 + $0xb00] sm:$0xff]
        %v813 = vld [vmem:[#allocation5 + $0xb08] sm:$0xff]
        %v814 = vld [vmem:[#allocation5 + $0xb10] sm:$0xff]
        %v815 = vld [vmem:[#allocation5 + $0xb18] sm:$0xff]
        %v816 = vld [vmem:[#allocation5 + $0xb20] sm:$0xff]
        %v817 = vld [vmem:[#allocation5 + $0xb28] sm:$0xff]
        %v818 = vld [vmem:[#allocation5 + $0xb30] sm:$0xff]
        %v819 = vld [vmem:[#allocation5 + $0xb38] sm:$0xff]
        %v820 = vld [vmem:[#allocation5 + $0xb40] sm:$0xff]
        %v821 = vld [vmem:[#allocation5 + $0xb48] sm:$0xff]
        %v822 = vld [vmem:[#allocation5 + $0xb50] sm:$0xff]
        %v823 = vld [vmem:[#allocation5 + $0xb58] sm:$0xff]
        %v824 = vld [vmem:[#allocation5 + $0xb60] sm:$0xff]
        %v825 = vld [vmem:[#allocation5 + $0xb68] sm:$0xff]
        %v826 = vld [vmem:[#allocation5 + $0xb70] sm:$0xff]
        %v827 = vld [vmem:[#allocation5 + $0xb78] sm:$0xff]
        %v828 = vld [vmem:[#allocation5 + $0xb80] sm:$0xff]
        %v829 = vld [vmem:[#allocation5 + $0xb88] sm:$0xff]
        %v830 = vld [vmem:[#allocation5 + $0xb90] sm:$0xff]
        %v831 = vld [vmem:[#allocation5 + $0xb98] sm:$0xff]
        %v832 = vld [vmem:[#allocation5 + $0xba0] sm:$0xff]
        %v833 = vld [vmem:[#allocation5 + $0xba8] sm:$0xff]
        %v834 = vld [vmem:[#allocation5 + $0xbb0] sm:$0xff]
        %v835 = vld [vmem:[#allocation5 + $0xbb8] sm:$0xff]
        %v836 = vld [vmem:[#allocation5 + $0xbc0] sm:$0xff]
        %v837 = vld [vmem:[#allocation5 + $0xbc8] sm:$0xff]
        %v838 = vld [vmem:[#allocation5 + $0xbd0] sm:$0xff]
        %v839 = vld [vmem:[#allocation5 + $0xbd8] sm:$0xff]
        %v840 = vld [vmem:[#allocation5 + $0xbe0] sm:$0xff]
        %v841 = vld [vmem:[#allocation5 + $0xbe8] sm:$0xff]
        %v842 = vld [vmem:[#allocation5 + $0xbf0] sm:$0xff]
        %v843 = vld [vmem:[#allocation5 + $0xbf8] sm:$0xff]
        %v844 = vld [vmem:[#allocation5 + $0xc00] sm:$0xff]
        %v845 = vld [vmem:[#allocation5 + $0xc08] sm:$0xff]
        %v846 = vld [vmem:[#allocation5 + $0xc10] sm:$0xff]
        %v847 = vld [vmem:[#allocation5 + $0xc18] sm:$0xff]
        %v848 = vld [vmem:[#allocation5 + $0xc20] sm:$0xff]
        %v849 = vld [vmem:[#allocation5 + $0xc28] sm:$0xff]
        %v850 = vld [vmem:[#allocation5 + $0xc30] sm:$0xff]
        %v851 = vld [vmem:[#allocation5 + $0xc38] sm:$0xff]
        %v852 = vld [vmem:[#allocation5 + $0xc40] sm:$0xff]
        %v853 = vld [vmem:[#allocation5 + $0xc48] sm:$0xff]
        %v854 = vld [vmem:[#allocation5 + $0xc50] sm:$0xff]
        %v855 = vld [vmem:[#allocation5 + $0xc58] sm:$0xff]
        %v856 = vld [vmem:[#allocation5 + $0xc60] sm:$0xff]
        %v857 = vld [vmem:[#allocation5 + $0xc68] sm:$0xff]
        %v858 = vld [vmem:[#allocation5 + $0xc70] sm:$0xff]
        %v859 = vld [vmem:[#allocation5 + $0xc78] sm:$0xff]
        %v860 = vld [vmem:[#allocation5 + $0xc80] sm:$0xff]
        %v861 = vld [vmem:[#allocation5 + $0xc88] sm:$0xff]
        %v862 = vld [vmem:[#allocation5 + $0xc90] sm:$0xff]
        %v863 = vld [vmem:[#allocation5 + $0xc98] sm:$0xff]
        %v864 = vld [vmem:[#allocation5 + $0xca0] sm:$0xff]
        %v865 = vld [vmem:[#allocation5 + $0xca8] sm:$0xff]
        %v866 = vld [vmem:[#allocation5 + $0xcb0] sm:$0xff]
        %v867 = vld [vmem:[#allocation5 + $0xcb8] sm:$0xff]
        %v868 = vld [vmem:[#allocation5 + $0xcc0] sm:$0xff]
        %v869 = vld [vmem:[#allocation5 + $0xcc8] sm:$0xff]
        %v870 = vld [vmem:[#allocation5 + $0xcd0] sm:$0xff]
        %v871 = vld [vmem:[#allocation5 + $0xcd8] sm:$0xff]
        %v872 = vld [vmem:[#allocation5 + $0xce0] sm:$0xff]
        %v873 = vld [vmem:[#allocation5 + $0xce8] sm:$0xff]
        %v874 = vld [vmem:[#allocation5 + $0xcf0] sm:$0xff]
        %v875 = vld [vmem:[#allocation5 + $0xcf8] sm:$0xff]
        %v876 = vld [vmem:[#allocation5 + $0xd00] sm:$0xff]
        %v877 = vld [vmem:[#allocation5 + $0xd08] sm:$0xff]
        %v878 = vld [vmem:[#allocation5 + $0xd10] sm:$0xff]
        %v879 = vld [vmem:[#allocation5 + $0xd18] sm:$0xff]
        %v880 = vld [vmem:[#allocation5 + $0xd20] sm:$0xff]
        %v881 = vld [vmem:[#allocation5 + $0xd28] sm:$0xff]
        %v882 = vld [vmem:[#allocation5 + $0xd30] sm:$0xff]
        %v883 = vld [vmem:[#allocation5 + $0xd38] sm:$0xff]
        %v884 = vld [vmem:[#allocation5 + $0xd40] sm:$0xff]
        %v885 = vld [vmem:[#allocation5 + $0xd48] sm:$0xff]
        %v886 = vld [vmem:[#allocation5 + $0xd50] sm:$0xff]
        %v887 = vld [vmem:[#allocation5 + $0xd58] sm:$0xff]
        %v888 = vld [vmem:[#allocation5 + $0xd60] sm:$0xff]
        %v889 = vld [vmem:[#allocation5 + $0xd68] sm:$0xff]
        %v890 = vld [vmem:[#allocation5 + $0xd70] sm:$0xff]
        %v891 = vld [vmem:[#allocation5 + $0xd78] sm:$0xff]
        %v892 = vld [vmem:[#allocation5 + $0xd80] sm:$0xff]
        %v893 = vld [vmem:[#allocation5 + $0xd88] sm:$0xff]
        %v894 = vld [vmem:[#allocation5 + $0xd90] sm:$0xff]
        %v895 = vld [vmem:[#allocation5 + $0xd98] sm:$0xff]
        %v896 = vld [vmem:[#allocation5 + $0xda0] sm:$0xff]
        %v897 = vld [vmem:[#allocation5 + $0xda8] sm:$0xff]
        %v898 = vld [vmem:[#allocation5 + $0xdb0] sm:$0xff]
        %v899 = vld [vmem:[#allocation5 + $0xdb8] sm:$0xff]
        %v900 = vld [vmem:[#allocation5 + $0xdc0] sm:$0xff]
        %v901 = vld [vmem:[#allocation5 + $0xdc8] sm:$0xff]
        %v902 = vld [vmem:[#allocation5 + $0xdd0] sm:$0xff]
        %v903 = vld [vmem:[#allocation5 + $0xdd8] sm:$0xff]
        %v904 = vld [vmem:[#allocation5 + $0xde0] sm:$0xff]
        %v905 = vld [vmem:[#allocation5 + $0xde8] sm:$0xff]
        %v906 = vld [vmem:[#allocation5 + $0xdf0] sm:$0xff]
        %v907 = vld [vmem:[#allocation5 + $0xdf8] sm:$0xff]
        %v908 = vld [vmem:[#allocation5 + $0xe00] sm:$0xff]
        %v909 = vld [vmem:[#allocation5 + $0xe08] sm:$0xff]
        %v910 = vld [vmem:[#allocation5 + $0xe10] sm:$0xff]
        %v911 = vld [vmem:[#allocation5 + $0xe18] sm:$0xff]
        %v912 = vld [vmem:[#allocation5 + $0xe20] sm:$0xff]
        %v913 = vld [vmem:[#allocation5 + $0xe28] sm:$0xff]
        %v914 = vld [vmem:[#allocation5 + $0xe30] sm:$0xff]
        %v915 = vld [vmem:[#allocation5 + $0xe38] sm:$0xff]
        %v916 = vld [vmem:[#allocation5 + $0xe40] sm:$0xff]
        %v917 = vld [vmem:[#allocation5 + $0xe48] sm:$0xff]
        %v918 = vld [vmem:[#allocation5 + $0xe50] sm:$0xff]
        %v919 = vld [vmem:[#allocation5 + $0xe58] sm:$0xff]
        %v920 = vld [vmem:[#allocation5 + $0xe60] sm:$0xff]
        %v921 = vld [vmem:[#allocation5 + $0xe68] sm:$0xff]
        %v922 = vld [vmem:[#allocation5 + $0xe70] sm:$0xff]
        %v923 = vld [vmem:[#allocation5 + $0xe78] sm:$0xff]
        %v924 = vld [vmem:[#allocation5 + $0xe80] sm:$0xff]
        %v925 = vld [vmem:[#allocation5 + $0xe88] sm:$0xff]
        %v926 = vld [vmem:[#allocation5 + $0xe90] sm:$0xff]
        %v927 = vld [vmem:[#allocation5 + $0xe98] sm:$0xff]
        %v928 = vld [vmem:[#allocation5 + $0xea0] sm:$0xff]
        %v929 = vld [vmem:[#allocation5 + $0xea8] sm:$0xff]
        %v930 = vld [vmem:[#allocation5 + $0xeb0] sm:$0xff]
        %v931 = vld [vmem:[#allocation5 + $0xeb8] sm:$0xff]
        %v932 = vld [vmem:[#allocation5 + $0xec0] sm:$0xff]
        %v933 = vld [vmem:[#allocation5 + $0xec8] sm:$0xff]
        %v934 = vld [vmem:[#allocation5 + $0xed0] sm:$0xff]
        %v935 = vld [vmem:[#allocation5 + $0xed8] sm:$0xff]
        %v936 = vld [vmem:[#allocation5 + $0xee0] sm:$0xff]
        %v937 = vld [vmem:[#allocation5 + $0xee8] sm:$0xff]
        %v938 = vld [vmem:[#allocation5 + $0xef0] sm:$0xff]
        %v939 = vld [vmem:[#allocation5 + $0xef8] sm:$0xff]
        %v940 = vld [vmem:[#allocation5 + $0xf00] sm:$0xff]
        %v941 = vld [vmem:[#allocation5 + $0xf08] sm:$0xff]
        %v942 = vld [vmem:[#allocation5 + $0xf10] sm:$0xff]
        %v943 = vld [vmem:[#allocation5 + $0xf18] sm:$0xff]
        %v944 = vld [vmem:[#allocation5 + $0xf20] sm:$0xff]
        %v945 = vld [vmem:[#allocation5 + $0xf28] sm:$0xff]
        %v946 = vld [vmem:[#allocation5 + $0xf30] sm:$0xff]
        %v947 = vld [vmem:[#allocation5 + $0xf38] sm:$0xff]
        %v948 = vld [vmem:[#allocation5 + $0xf40] sm:$0xff]
        %v949 = vld [vmem:[#allocation5 + $0xf48] sm:$0xff]
        %v950 = vld [vmem:[#allocation5 + $0xf50] sm:$0xff]
        %v951 = vld [vmem:[#allocation5 + $0xf58] sm:$0xff]
        %v952 = vld [vmem:[#allocation5 + $0xf60] sm:$0xff]
        %v953 = vld [vmem:[#allocation5 + $0xf68] sm:$0xff]
        %v954 = vld [vmem:[#allocation5 + $0xf70] sm:$0xff]
        %v955 = vld [vmem:[#allocation5 + $0xf78] sm:$0xff]
        %v956 = vld [vmem:[#allocation5 + $0xf80] sm:$0xff]
        %v957 = vld [vmem:[#allocation5 + $0xf88] sm:$0xff]
        %v958 = vld [vmem:[#allocation5 + $0xf90] sm:$0xff]
        %v959 = vld [vmem:[#allocation5 + $0xf98] sm:$0xff]
        %v960 = vld [vmem:[#allocation7] sm:$0x3]
        %v962 = vlaneseq
        %v963 = vshrl.u32 %v962, 7
        %v964 = vsub.s32 0, %v963
        %v965 = vrot.slane %v960, %v964
        %v966 = vlaneseq
        %v967 = vshrl.u32 %v966, 7
        %v968 = vsub.s32 1, %v967
        %v969 = vrot.slane %v960, %v968
        %vm972 = vcmask 654336
        %v974 = vsel %vm972, %v315, 0
        %v977 = vsel %vm972, %v331, 0
        %v980 = vsel %vm972, %v347, 0
        %v983 = vsel %vm972, %v363, 0
        %v986 = vsel %vm972, %v379, 0
        %v989 = vsel %vm972, %v395, 0
        %v992 = vsel %vm972, %v411, 0
        %v995 = vsel %vm972, %v427, 0
        %v998 = vsel %vm972, %v443, 0
        %v1001 = vsel %vm972, %v459, 0
        %1003 = vmatprep.subr.mxu0 %v461
        %1004 = vmatpush1.msra.mxu0 %v460
        %1005 = vmatprep.subr.mxu0 %v463
        %1006 = vmatpush1.msra.mxu0 %v462
        %1007 = vmatprep.subr.mxu0 %v465
        %1008 = vmatpush1.msra.mxu0 %v464
        %1009 = vmatprep.subr.mxu0 %v467
        %1010 = vmatpush1.msra.mxu0 %v466
        %1011 = vmatprep.subr.mxu0 %v469
        %1012 = vmatpush1.msra.mxu0 %v468
        %1013 = vmatprep.subr.mxu0 %v471
        %1014 = vmatpush1.msra.mxu0 %v470
        %1015 = vmatprep.subr.mxu0 %v473
        %1016 = vmatpush1.msra.mxu0 %v472
        %1017 = vmatprep.subr.mxu0 %v475
        %1018 = vmatpush1.msra.mxu0 %v474
        %1019 = vmatprep.subr.mxu0 %v477
        %1020 = vmatpush1.msra.mxu0 %v476
        %1021 = vmatprep.subr.mxu0 %v479
        %1022 = vmatpush1.msra.mxu0 %v478
        %1023 = vmatprep.subr.mxu0 %v481
        %1024 = vmatpush1.msra.mxu0 %v480
        %1025 = vmatprep.subr.mxu0 %v483
        %1026 = vmatpush1.msra.mxu0 %v482
        %1027 = vmatprep.subr.mxu0 %v485
        %1028 = vmatpush1.msra.mxu0 %v484
        %1029 = vmatprep.subr.mxu0 %v487
        %1030 = vmatpush1.msra.mxu0 %v486
        %1031 = vmatprep.subr.mxu0 %v489
        %1032 = vmatpush1.msra.mxu0 %v488
        %1033 = vmatprep.subr.mxu0 %v491
        %1034 = vmatpush1.msra.mxu0 %v490
        %1035 = vmatprep.subr.mxu0 %v493
        %1036 = vmatpush1.msra.mxu0 %v492
        %1037 = vmatprep.subr.mxu0 %v495
        %1038 = vmatpush1.msra.mxu0 %v494
        %1039 = vmatprep.subr.mxu0 %v497
        %1040 = vmatpush1.msra.mxu0 %v496
        %1041 = vmatprep.subr.mxu0 %v499
        %1042 = vmatpush1.msra.mxu0 %v498
        %1043 = vmatprep.subr.mxu0 %v501
        %1044 = vmatpush1.msra.mxu0 %v500
        %1045 = vmatprep.subr.mxu0 %v503
        %1046 = vmatpush1.msra.mxu0 %v502
        %1047 = vmatprep.subr.mxu0 %v505
        %1048 = vmatpush1.msra.mxu0 %v504
        %1049 = vmatprep.subr.mxu0 %v507
        %1050 = vmatpush1.msra.mxu0 %v506
        %1051 = vmatprep.subr.mxu0 %v509
        %1052 = vmatpush1.msra.mxu0 %v508
        %1053 = vmatprep.subr.mxu0 %v511
        %1054 = vmatpush1.msra.mxu0 %v510
        %1055 = vmatprep.subr.mxu0 %v513
        %1056 = vmatpush1.msra.mxu0 %v512
        %1057 = vmatprep.subr.mxu0 %v515
        %1058 = vmatpush1.msra.mxu0 %v514
        %1059 = vmatprep.subr.mxu0 %v517
        %1060 = vmatpush1.msra.mxu0 %v516
        %1061 = vmatprep.subr.mxu0 %v519
        %1062 = vmatpush1.msra.mxu0 %v518
        %1063 = vmatprep.subr.mxu0 %v521
        %1064 = vmatpush1.msra.mxu0 %v520
        %1065 = vmatprep.subr.mxu0 %v523
        %1066 = vmatpush1.msra.mxu0 %v522
        %1067 = vmatprep.mubr.f32.mxu0 %v301
        %1068 = vmatmul.mubr.f32.gmra.mrb[0].mxu0 %v300
        %v1069 = vpop.f32.mrb[0].mxu0
        %v1070 = vadd.f32 %v965, %v1069
        %v1071 = vpop.f32.mrb[0].mxu0
        %v1072 = vadd.f32 %v969, %v1071
        %1073 = vmatprep.mubr.f32.mxu0 %v317
        %1074 = vmatmul.mubr.f32.gmra.mrb[0].mxu0 %v316
        %v1075 = vpop.f32.mrb[0].mxu0
        %v1076 = vadd.f32 %v965, %v1075
        %v1077 = vpop.f32.mrb[0].mxu0
        %v1078 = vadd.f32 %v969, %v1077
        %1079 = vmatprep.mubr.f32.mxu0 %v333
        %1080 = vmatmul.mubr.f32.gmra.mrb[0].mxu0 %v332
        %v1081 = vpop.f32.mrb[0].mxu0
        %v1082 = vadd.f32 %v965, %v1081
        %v1083 = vpop.f32.mrb[0].mxu0
        %v1084 = vadd.f32 %v969, %v1083
        %1085 = vmatprep.mubr.f32.mxu0 %v349
        %1086 = vmatmul.mubr.f32.gmra.mrb[0].mxu0 %v348
        %v1087 = vpop.f32.mrb[0].mxu0
        %v1088 = vadd.f32 %v965, %v1087
        %v1089 = vpop.f32.mrb[0].mxu0
        %v1090 = vadd.f32 %v969, %v1089
        %1091 = vmatprep.mubr.f32.mxu0 %v365
        %1092 = vmatmul.mubr.f32.gmra.mrb[0].mxu0 %v364
        %v1093 = vpop.f32.mrb[0].mxu0
        %v1094 = vadd.f32 %v965, %v1093
        %v1095 = vpop.f32.mrb[0].mxu0
        %v1096 = vadd.f32 %v969, %v1095
        %1097 = vmatprep.mubr.f32.mxu0 %v381
        %1098 = vmatmul.mubr.f32.gmra.mrb[0].mxu0 %v380
        %v1099 = vpop.f32.mrb[0].mxu0
        %v1100 = vadd.f32 %v965, %v1099
        %v1101 = vpop.f32.mrb[0].mxu0
        %v1102 = vadd.f32 %v969, %v1101
        %1103 = vmatprep.mubr.f32.mxu0 %v397
        %1104 = vmatmul.mubr.f32.gmra.mrb[0].mxu0 %v396
        %v1105 = vpop.f32.mrb[0].mxu0
        %v1106 = vadd.f32 %v965, %v1105
        %v1107 = vpop.f32.mrb[0].mxu0
        %v1108 = vadd.f32 %v969, %v1107
        %1109 = vmatprep.mubr.f32.mxu0 %v413
        %1110 = vmatmul.mubr.f32.gmra.mrb[0].mxu0 %v412
        %v1111 = vpop.f32.mrb[0].mxu0
        %v1112 = vadd.f32 %v965, %v1111
        %v1113 = vpop.f32.mrb[0].mxu0
        %v1114 = vadd.f32 %v969, %v1113
        %1115 = vmatprep.mubr.f32.mxu0 %v429
        %1116 = vmatmul.mubr.f32.gmra.mrb[0].mxu0 %v428
        %v1117 = vpop.f32.mrb[0].mxu0
        %v1118 = vadd.f32 %v965, %v1117
        %v1119 = vpop.f32.mrb[0].mxu0
        %v1120 = vadd.f32 %v969, %v1119
        %1121 = vmatprep.mubr.f32.mxu0 %v445
        %1122 = vmatmul.mubr.f32.gmra.mrb[0].mxu0 %v444
        %v1123 = vpop.f32.mrb[0].mxu0
        %v1124 = vadd.f32 %v965, %v1123
        %v1125 = vpop.f32.mrb[0].mxu0
        %v1126 = vadd.f32 %v969, %v1125
        %1127 = vdwg.mxu0
        %1128 = vmatprep.subr.mxu0 %v525
        %1129 = vmatpush1.msra.mxu0 %v524
        %1130 = vmatprep.subr.mxu0 %v527
        %1131 = vmatpush1.msra.mxu0 %v526
        %1132 = vmatprep.subr.mxu0 %v529
        %1133 = vmatpush1.msra.mxu0 %v528
        %1134 = vmatprep.subr.mxu0 %v531
        %1135 = vmatpush1.msra.mxu0 %v530
        %1136 = vmatprep.subr.mxu0 %v533
        %1137 = vmatpush1.msra.mxu0 %v532
        %1138 = vmatprep.subr.mxu0 %v535
        %1139 = vmatpush1.msra.mxu0 %v534
        %1140 = vmatprep.subr.mxu0 %v537
        %1141 = vmatpush1.msra.mxu0 %v536
        %1142 = vmatprep.subr.mxu0 %v539
        %1143 = vmatpush1.msra.mxu0 %v538
        %1144 = vmatprep.subr.mxu0 %v541
        %1145 = vmatpush1.msra.mxu0 %v540
        %1146 = vmatprep.subr.mxu0 %v543
        %1147 = vmatpush1.msra.mxu0 %v542
        %1148 = vmatprep.subr.mxu0 %v545
        %1149 = vmatpush1.msra.mxu0 %v544
        %1150 = vmatprep.subr.mxu0 %v547
        %1151 = vmatpush1.msra.mxu0 %v546
        %1152 = vmatprep.subr.mxu0 %v549
        %1153 = vmatpush1.msra.mxu0 %v548
        %1154 = vmatprep.subr.mxu0 %v551
        %1155 = vmatpush1.msra.mxu0 %v550
        %1156 = vmatprep.subr.mxu0 %v553
        %1157 = vmatpush1.msra.mxu0 %v552
        %1158 = vmatprep.subr.mxu0 %v555
        %1159 = vmatpush1.msra.mxu0 %v554
        %1160 = vmatprep.subr.mxu0 %v557
        %1161 = vmatpush1.msra.mxu0 %v556
        %1162 = vmatprep.subr.mxu0 %v559
        %1163 = vmatpush1.msra.mxu0 %v558
        %1164 = vmatprep.subr.mxu0 %v561
        %1165 = vmatpush1.msra.mxu0 %v560
        %1166 = vmatprep.subr.mxu0 %v563
        %1167 = vmatpush1.msra.mxu0 %v562
        %1168 = vmatprep.subr.mxu0 %v565
        %1169 = vmatpush1.msra.mxu0 %v564
        %1170 = vmatprep.subr.mxu0 %v567
        %1171 = vmatpush1.msra.mxu0 %v566
        %1172 = vmatprep.subr.mxu0 %v569
        %1173 = vmatpush1.msra.mxu0 %v568
        %1174 = vmatprep.subr.mxu0 %v571
        %1175 = vmatpush1.msra.mxu0 %v570
        %1176 = vmatprep.subr.mxu0 %v573
        %1177 = vmatpush1.msra.mxu0 %v572
        %1178 = vmatprep.subr.mxu0 %v575
        %1179 = vmatpush1.msra.mxu0 %v574
        %1180 = vmatprep.subr.mxu0 %v577
        %1181 = vmatpush1.msra.mxu0 %v576
        %1182 = vmatprep.subr.mxu0 %v579
        %1183 = vmatpush1.msra.mxu0 %v578
        %1184 = vmatprep.subr.mxu0 %v581
        %1185 = vmatpush1.msra.mxu0 %v580
        %1186 = vmatprep.subr.mxu0 %v583
        %1187 = vmatpush1.msra.mxu0 %v582
        %1188 = vmatprep.subr.mxu0 %v585
        %1189 = vmatpush1.msra.mxu0 %v584
        %1190 = vmatprep.subr.mxu0 %v587
        %1191 = vmatpush1.msra.mxu0 %v586
        %1192 = vmatprep.mubr.f32.mxu0 %v303
        %1193 = vmatmul.mubr.f32.gmra.mrb[0].mxu0 %v302
        %v1194 = vpop.f32.mrb[0].mxu0
        %v1195 = vadd.f32 %v1070, %v1194
        %v1196 = vpop.f32.mrb[0].mxu0
        %v1197 = vadd.f32 %v1072, %v1196
        %1198 = vmatprep.mubr.f32.mxu0 %v319
        %1199 = vmatmul.mubr.f32.gmra.mrb[0].mxu0 %v318
        %v1200 = vpop.f32.mrb[0].mxu0
        %v1201 = vadd.f32 %v1076, %v1200
        %v1202 = vpop.f32.mrb[0].mxu0
        %v1203 = vadd.f32 %v1078, %v1202
        %1204 = vmatprep.mubr.f32.mxu0 %v335
        %1205 = vmatmul.mubr.f32.gmra.mrb[0].mxu0 %v334
        %v1206 = vpop.f32.mrb[0].mxu0
        %v1207 = vadd.f32 %v1082, %v1206
        %v1208 = vpop.f32.mrb[0].mxu0
        %v1209 = vadd.f32 %v1084, %v1208
        %1210 = vmatprep.mubr.f32.mxu0 %v351
        %1211 = vmatmul.mubr.f32.gmra.mrb[0].mxu0 %v350
        %v1212 = vpop.f32.mrb[0].mxu0
        %v1213 = vadd.f32 %v1088, %v1212
        %v1214 = vpop.f32.mrb[0].mxu0
        %v1215 = vadd.f32 %v1090, %v1214
        %1216 = vmatprep.mubr.f32.mxu0 %v367
        %1217 = vmatmul.mubr.f32.gmra.mrb[0].mxu0 %v366
        %v1218 = vpop.f32.mrb[0].mxu0
        %v1219 = vadd.f32 %v1094, %v1218
        %v1220 = vpop.f32.mrb[0].mxu0
        %v1221 = vadd.f32 %v1096, %v1220
        %1222 = vmatprep.mubr.f32.mxu0 %v383
        %1223 = vmatmul.mubr.f32.gmra.mrb[0].mxu0 %v382
        %v1224 = vpop.f32.mrb[0].mxu0
        %v1225 = vadd.f32 %v1100, %v1224
        %v1226 = vpop.f32.mrb[0].mxu0
        %v1227 = vadd.f32 %v1102, %v1226
        %1228 = vmatprep.mubr.f32.mxu0 %v399
        %1229 = vmatmul.mubr.f32.gmra.mrb[0].mxu0 %v398
        %v1230 = vpop.f32.mrb[0].mxu0
        %v1231 = vadd.f32 %v1106, %v1230
        %v1232 = vpop.f32.mrb[0].mxu0
        %v1233 = vadd.f32 %v1108, %v1232
        %1234 = vmatprep.mubr.f32.mxu0 %v415
        %1235 = vmatmul.mubr.f32.gmra.mrb[0].mxu0 %v414
        %v1236 = vpop.f32.mrb[0].mxu0
        %v1237 = vadd.f32 %v1112, %v1236
        %v1238 = vpop.f32.mrb[0].mxu0
        %v1239 = vadd.f32 %v1114, %v1238
        %1240 = vmatprep.mubr.f32.mxu0 %v431
        %1241 = vmatmul.mubr.f32.gmra.mrb[0].mxu0 %v430
        %v1242 = vpop.f32.mrb[0].mxu0
        %v1243 = vadd.f32 %v1118, %v1242
        %v1244 = vpop.f32.mrb[0].mxu0
        %v1245 = vadd.f32 %v1120, %v1244
        %1246 = vmatprep.mubr.f32.mxu0 %v447
        %1247 = vmatmul.mubr.f32.gmra.mrb[0].mxu0 %v446
        %v1248 = vpop.f32.mrb[0].mxu0
        %v1249 = vadd.f32 %v1124, %v1248
        %v1250 = vpop.f32.mrb[0].mxu0
        %v1251 = vadd.f32 %v1126, %v1250
        %1252 = vdwg.mxu0
        %1253 = vmatprep.subr.mxu0 %v589
        %1254 = vmatpush1.msra.mxu0 %v588
        %1255 = vmatprep.subr.mxu0 %v591
        %1256 = vmatpush1.msra.mxu0 %v590
        %1257 = vmatprep.subr.mxu0 %v593
        %1258 = vmatpush1.msra.mxu0 %v592
        %1259 = vmatprep.subr.mxu0 %v595
        %1260 = vmatpush1.msra.mxu0 %v594
        %1261 = vmatprep.subr.mxu0 %v597
        %1262 = vmatpush1.msra.mxu0 %v596
        %1263 = vmatprep.subr.mxu0 %v599
        %1264 = vmatpush1.msra.mxu0 %v598
        %1265 = vmatprep.subr.mxu0 %v601
        %1266 = vmatpush1.msra.mxu0 %v600
        %1267 = vmatprep.subr.mxu0 %v603
        %1268 = vmatpush1.msra.mxu0 %v602
        %1269 = vmatprep.subr.mxu0 %v605
        %1270 = vmatpush1.msra.mxu0 %v604
        %1271 = vmatprep.subr.mxu0 %v607
        %1272 = vmatpush1.msra.mxu0 %v606
        %1273 = vmatprep.subr.mxu0 %v609
        %1274 = vmatpush1.msra.mxu0 %v608
        %1275 = vmatprep.subr.mxu0 %v611
        %1276 = vmatpush1.msra.mxu0 %v610
        %1277 = vmatprep.subr.mxu0 %v613
        %1278 = vmatpush1.msra.mxu0 %v612
        %1279 = vmatprep.subr.mxu0 %v615
        %1280 = vmatpush1.msra.mxu0 %v614
        %1281 = vmatprep.subr.mxu0 %v617
        %1282 = vmatpush1.msra.mxu0 %v616
        %1283 = vmatprep.subr.mxu0 %v619
        %1284 = vmatpush1.msra.mxu0 %v618
        %1285 = vmatprep.subr.mxu0 %v621
        %1286 = vmatpush1.msra.mxu0 %v620
        %1287 = vmatprep.subr.mxu0 %v623
        %1288 = vmatpush1.msra.mxu0 %v622
        %1289 = vmatprep.subr.mxu0 %v625
        %1290 = vmatpush1.msra.mxu0 %v624
        %1291 = vmatprep.subr.mxu0 %v627
        %1292 = vmatpush1.msra.mxu0 %v626
        %1293 = vmatprep.subr.mxu0 %v629
        %1294 = vmatpush1.msra.mxu0 %v628
        %1295 = vmatprep.subr.mxu0 %v631
        %1296 = vmatpush1.msra.mxu0 %v630
        %1297 = vmatprep.subr.mxu0 %v633
        %1298 = vmatpush1.msra.mxu0 %v632
        %1299 = vmatprep.subr.mxu0 %v635
        %1300 = vmatpush1.msra.mxu0 %v634
        %1301 = vmatprep.subr.mxu0 %v637
        %1302 = vmatpush1.msra.mxu0 %v636
        %1303 = vmatprep.subr.mxu0 %v639
        %1304 = vmatpush1.msra.mxu0 %v638
        %1305 = vmatprep.subr.mxu0 %v641
        %1306 = vmatpush1.msra.mxu0 %v640
        %1307 = vmatprep.subr.mxu0 %v643
        %1308 = vmatpush1.msra.mxu0 %v642
        %1309 = vmatprep.subr.mxu0 %v645
        %1310 = vmatpush1.msra.mxu0 %v644
        %1311 = vmatprep.subr.mxu0 %v647
        %1312 = vmatpush1.msra.mxu0 %v646
        %1313 = vmatprep.subr.mxu0 %v649
        %1314 = vmatpush1.msra.mxu0 %v648
        %1315 = vmatprep.subr.mxu0 %v651
        %1316 = vmatpush1.msra.mxu0 %v650
        %1317 = vmatprep.mubr.f32.mxu0 %v305
        %1318 = vmatmul.mubr.f32.gmra.mrb[0].mxu0 %v304
        %v1319 = vpop.f32.mrb[0].mxu0
        %v1320 = vadd.f32 %v1195, %v1319
        %v1321 = vpop.f32.mrb[0].mxu0
        %v1322 = vadd.f32 %v1197, %v1321
        %1323 = vmatprep.mubr.f32.mxu0 %v321
        %1324 = vmatmul.mubr.f32.gmra.mrb[0].mxu0 %v320
        %v1325 = vpop.f32.mrb[0].mxu0
        %v1326 = vadd.f32 %v1201, %v1325
        %v1327 = vpop.f32.mrb[0].mxu0
        %v1328 = vadd.f32 %v1203, %v1327
        %1329 = vmatprep.mubr.f32.mxu0 %v337
        %1330 = vmatmul.mubr.f32.gmra.mrb[0].mxu0 %v336
        %v1331 = vpop.f32.mrb[0].mxu0
        %v1332 = vadd.f32 %v1207, %v1331
        %v1333 = vpop.f32.mrb[0].mxu0
        %v1334 = vadd.f32 %v1209, %v1333
        %1335 = vmatprep.mubr.f32.mxu0 %v353
        %1336 = vmatmul.mubr.f32.gmra.mrb[0].mxu0 %v352
        %v1337 = vpop.f32.mrb[0].mxu0
        %v1338 = vadd.f32 %v1213, %v1337
        %v1339 = vpop.f32.mrb[0].mxu0
        %v1340 = vadd.f32 %v1215, %v1339
        %1341 = vmatprep.mubr.f32.mxu0 %v369
        %1342 = vmatmul.mubr.f32.gmra.mrb[0].mxu0 %v368
        %v1343 = vpop.f32.mrb[0].mxu0
        %v1344 = vadd.f32 %v1219, %v1343
        %v1345 = vpop.f32.mrb[0].mxu0
        %v1346 = vadd.f32 %v1221, %v1345
        %1347 = vmatprep.mubr.f32.mxu0 %v385
        %1348 = vmatmul.mubr.f32.gmra.mrb[0].mxu0 %v384
        %v1349 = vpop.f32.mrb[0].mxu0
        %v1350 = vadd.f32 %v1225, %v1349
        %v1351 = vpop.f32.mrb[0].mxu0
        %v1352 = vadd.f32 %v1227, %v1351
        %1353 = vmatprep.mubr.f32.mxu0 %v401
        %1354 = vmatmul.mubr.f32.gmra.mrb[0].mxu0 %v400
        %v1355 = vpop.f32.mrb[0].mxu0
        %v1356 = vadd.f32 %v1231, %v1355
        %v1357 = vpop.f32.mrb[0].mxu0
        %v1358 = vadd.f32 %v1233, %v1357
        %1359 = vmatprep.mubr.f32.mxu0 %v417
        %1360 = vmatmul.mubr.f32.gmra.mrb[0].mxu0 %v416
        %v1361 = vpop.f32.mrb[0].mxu0
        %v1362 = vadd.f32 %v1237, %v1361
        %v1363 = vpop.f32.mrb[0].mxu0
        %v1364 = vadd.f32 %v1239, %v1363
        %1365 = vmatprep.mubr.f32.mxu0 %v433
        %1366 = vmatmul.mubr.f32.gmra.mrb[0].mxu0 %v432
        %v1367 = vpop.f32.mrb[0].mxu0
        %v1368 = vadd.f32 %v1243, %v1367
        %v1369 = vpop.f32.mrb[0].mxu0
        %v1370 = vadd.f32 %v1245, %v1369
        %1371 = vmatprep.mubr.f32.mxu0 %v449
        %1372 = vmatmul.mubr.f32.gmra.mrb[0].mxu0 %v448
        %v1373 = vpop.f32.mrb[0].mxu0
        %v1374 = vadd.f32 %v1249, %v1373
        %v1375 = vpop.f32.mrb[0].mxu0
        %v1376 = vadd.f32 %v1251, %v1375
        %1377 = vdwg.mxu0
        %1378 = vmatprep.subr.mxu0 %v653
        %1379 = vmatpush1.msra.mxu0 %v652
        %1380 = vmatprep.subr.mxu0 %v655
        %1381 = vmatpush1.msra.mxu0 %v654
        %1382 = vmatprep.subr.mxu0 %v657
        %1383 = vmatpush1.msra.mxu0 %v656
        %1384 = vmatprep.subr.mxu0 %v659
        %1385 = vmatpush1.msra.mxu0 %v658
        %1386 = vmatprep.subr.mxu0 %v661
        %1387 = vmatpush1.msra.mxu0 %v660
        %1388 = vmatprep.subr.mxu0 %v663
        %1389 = vmatpush1.msra.mxu0 %v662
        %1390 = vmatprep.subr.mxu0 %v665
        %1391 = vmatpush1.msra.mxu0 %v664
        %1392 = vmatprep.subr.mxu0 %v667
        %1393 = vmatpush1.msra.mxu0 %v666
        %1394 = vmatprep.subr.mxu0 %v669
        %1395 = vmatpush1.msra.mxu0 %v668
        %1396 = vmatprep.subr.mxu0 %v671
        %1397 = vmatpush1.msra.mxu0 %v670
        %1398 = vmatprep.subr.mxu0 %v673
        %1399 = vmatpush1.msra.mxu0 %v672
        %1400 = vmatprep.subr.mxu0 %v675
        %1401 = vmatpush1.msra.mxu0 %v674
        %1402 = vmatprep.subr.mxu0 %v677
        %1403 = vmatpush1.msra.mxu0 %v676
        %1404 = vmatprep.subr.mxu0 %v679
        %1405 = vmatpush1.msra.mxu0 %v678
        %1406 = vmatprep.subr.mxu0 %v681
        %1407 = vmatpush1.msra.mxu0 %v680
        %1408 = vmatprep.subr.mxu0 %v683
        %1409 = vmatpush1.msra.mxu0 %v682
        %1410 = vmatprep.subr.mxu0 %v685
        %1411 = vmatpush1.msra.mxu0 %v684
        %1412 = vmatprep.subr.mxu0 %v687
        %1413 = vmatpush1.msra.mxu0 %v686
        %1414 = vmatprep.subr.mxu0 %v689
        %1415 = vmatpush1.msra.mxu0 %v688
        %1416 = vmatprep.subr.mxu0 %v691
        %1417 = vmatpush1.msra.mxu0 %v690
        %1418 = vmatprep.subr.mxu0 %v693
        %1419 = vmatpush1.msra.mxu0 %v692
        %1420 = vmatprep.subr.mxu0 %v695
        %1421 = vmatpush1.msra.mxu0 %v694
        %1422 = vmatprep.subr.mxu0 %v697
        %1423 = vmatpush1.msra.mxu0 %v696
        %1424 = vmatprep.subr.mxu0 %v699
        %1425 = vmatpush1.msra.mxu0 %v698
        %1426 = vmatprep.subr.mxu0 %v701
        %1427 = vmatpush1.msra.mxu0 %v700
        %1428 = vmatprep.subr.mxu0 %v703
        %1429 = vmatpush1.msra.mxu0 %v702
        %1430 = vmatprep.subr.mxu0 %v705
        %1431 = vmatpush1.msra.mxu0 %v704
        %1432 = vmatprep.subr.mxu0 %v707
        %1433 = vmatpush1.msra.mxu0 %v706
        %1434 = vmatprep.subr.mxu0 %v709
        %1435 = vmatpush1.msra.mxu0 %v708
        %1436 = vmatprep.subr.mxu0 %v711
        %1437 = vmatpush1.msra.mxu0 %v710
        %1438 = vmatprep.subr.mxu0 %v713
        %1439 = vmatpush1.msra.mxu0 %v712
        %1440 = vmatprep.subr.mxu0 %v715
        %1441 = vmatpush1.msra.mxu0 %v714
        %1442 = vmatprep.mubr.f32.mxu0 %v307
        %1443 = vmatmul.mubr.f32.gmra.mrb[0].mxu0 %v306
        %v1444 = vpop.f32.mrb[0].mxu0
        %v1445 = vadd.f32 %v1320, %v1444
        %v1446 = vpop.f32.mrb[0].mxu0
        %v1447 = vadd.f32 %v1322, %v1446
        %1448 = vmatprep.mubr.f32.mxu0 %v323
        %1449 = vmatmul.mubr.f32.gmra.mrb[0].mxu0 %v322
        %v1450 = vpop.f32.mrb[0].mxu0
        %v1451 = vadd.f32 %v1326, %v1450
        %v1452 = vpop.f32.mrb[0].mxu0
        %v1453 = vadd.f32 %v1328, %v1452
        %1454 = vmatprep.mubr.f32.mxu0 %v339
        %1455 = vmatmul.mubr.f32.gmra.mrb[0].mxu0 %v338
        %v1456 = vpop.f32.mrb[0].mxu0
        %v1457 = vadd.f32 %v1332, %v1456
        %v1458 = vpop.f32.mrb[0].mxu0
        %v1459 = vadd.f32 %v1334, %v1458
        %1460 = vmatprep.mubr.f32.mxu0 %v355
        %1461 = vmatmul.mubr.f32.gmra.mrb[0].mxu0 %v354
        %v1462 = vpop.f32.mrb[0].mxu0
        %v1463 = vadd.f32 %v1338, %v1462
        %v1464 = vpop.f32.mrb[0].mxu0
        %v1465 = vadd.f32 %v1340, %v1464
        %1466 = vmatprep.mubr.f32.mxu0 %v371
        %1467 = vmatmul.mubr.f32.gmra.mrb[0].mxu0 %v370
        %v1468 = vpop.f32.mrb[0].mxu0
        %v1469 = vadd.f32 %v1344, %v1468
        %v1470 = vpop.f32.mrb[0].mxu0
        %v1471 = vadd.f32 %v1346, %v1470
        %1472 = vmatprep.mubr.f32.mxu0 %v387
        %1473 = vmatmul.mubr.f32.gmra.mrb[0].mxu0 %v386
        %v1474 = vpop.f32.mrb[0].mxu0
        %v1475 = vadd.f32 %v1350, %v1474
        %v1476 = vpop.f32.mrb[0].mxu0
        %v1477 = vadd.f32 %v1352, %v1476
        %1478 = vmatprep.mubr.f32.mxu0 %v403
        %1479 = vmatmul.mubr.f32.gmra.mrb[0].mxu0 %v402
        %v1480 = vpop.f32.mrb[0].mxu0
        %v1481 = vadd.f32 %v1356, %v1480
        %v1482 = vpop.f32.mrb[0].mxu0
        %v1483 = vadd.f32 %v1358, %v1482
        %1484 = vmatprep.mubr.f32.mxu0 %v419
        %1485 = vmatmul.mubr.f32.gmra.mrb[0].mxu0 %v418
        %v1486 = vpop.f32.mrb[0].mxu0
        %v1487 = vadd.f32 %v1362, %v1486
        %v1488 = vpop.f32.mrb[0].mxu0
        %v1489 = vadd.f32 %v1364, %v1488
        %1490 = vmatprep.mubr.f32.mxu0 %v435
        %1491 = vmatmul.mubr.f32.gmra.mrb[0].mxu0 %v434
        %v1492 = vpop.f32.mrb[0].mxu0
        %v1493 = vadd.f32 %v1368, %v1492
        %v1494 = vpop.f32.mrb[0].mxu0
        %v1495 = vadd.f32 %v1370, %v1494
        %1496 = vmatprep.mubr.f32.mxu0 %v451
        %1497 = vmatmul.mubr.f32.gmra.mrb[0].mxu0 %v450
        %v1498 = vpop.f32.mrb[0].mxu0
        %v1499 = vadd.f32 %v1374, %v1498
        %v1500 = vpop.f32.mrb[0].mxu0
        %v1501 = vadd.f32 %v1376, %v1500
        %1502 = vdwg.mxu0
        %1503 = vmatprep.subr.mxu0 %v717
        %1504 = vmatpush1.msra.mxu0 %v716
        %1505 = vmatprep.subr.mxu0 %v719
        %1506 = vmatpush1.msra.mxu0 %v718
        %1507 = vmatprep.subr.mxu0 %v721
        %1508 = vmatpush1.msra.mxu0 %v720
        %1509 = vmatprep.subr.mxu0 %v723
        %1510 = vmatpush1.msra.mxu0 %v722
        %1511 = vmatprep.subr.mxu0 %v725
        %1512 = vmatpush1.msra.mxu0 %v724
        %1513 = vmatprep.subr.mxu0 %v727
        %1514 = vmatpush1.msra.mxu0 %v726
        %1515 = vmatprep.subr.mxu0 %v729
        %1516 = vmatpush1.msra.mxu0 %v728
        %1517 = vmatprep.subr.mxu0 %v731
        %1518 = vmatpush1.msra.mxu0 %v730
        %1519 = vmatprep.subr.mxu0 %v733
        %1520 = vmatpush1.msra.mxu0 %v732
        %1521 = vmatprep.subr.mxu0 %v735
        %1522 = vmatpush1.msra.mxu0 %v734
        %1523 = vmatprep.subr.mxu0 %v737
        %1524 = vmatpush1.msra.mxu0 %v736
        %1525 = vmatprep.subr.mxu0 %v739
        %1526 = vmatpush1.msra.mxu0 %v738
        %1527 = vmatprep.subr.mxu0 %v741
        %1528 = vmatpush1.msra.mxu0 %v740
        %1529 = vmatprep.subr.mxu0 %v743
        %1530 = vmatpush1.msra.mxu0 %v742
        %1531 = vmatprep.subr.mxu0 %v745
        %1532 = vmatpush1.msra.mxu0 %v744
        %1533 = vmatprep.subr.mxu0 %v747
        %1534 = vmatpush1.msra.mxu0 %v746
        %1535 = vmatprep.subr.mxu0 %v749
        %1536 = vmatpush1.msra.mxu0 %v748
        %1537 = vmatprep.subr.mxu0 %v751
        %1538 = vmatpush1.msra.mxu0 %v750
        %1539 = vmatprep.subr.mxu0 %v753
        %1540 = vmatpush1.msra.mxu0 %v752
        %1541 = vmatprep.subr.mxu0 %v755
        %1542 = vmatpush1.msra.mxu0 %v754
        %1543 = vmatprep.subr.mxu0 %v757
        %1544 = vmatpush1.msra.mxu0 %v756
        %1545 = vmatprep.subr.mxu0 %v759
        %1546 = vmatpush1.msra.mxu0 %v758
        %1547 = vmatprep.subr.mxu0 %v761
        %1548 = vmatpush1.msra.mxu0 %v760
        %1549 = vmatprep.subr.mxu0 %v763
        %1550 = vmatpush1.msra.mxu0 %v762
        %1551 = vmatprep.subr.mxu0 %v765
        %1552 = vmatpush1.msra.mxu0 %v764
        %1553 = vmatprep.subr.mxu0 %v767
        %1554 = vmatpush1.msra.mxu0 %v766
        %1555 = vmatprep.subr.mxu0 %v769
        %1556 = vmatpush1.msra.mxu0 %v768
        %1557 = vmatprep.subr.mxu0 %v771
        %1558 = vmatpush1.msra.mxu0 %v770
        %1559 = vmatprep.subr.mxu0 %v773
        %1560 = vmatpush1.msra.mxu0 %v772
        %1561 = vmatprep.subr.mxu0 %v775
        %1562 = vmatpush1.msra.mxu0 %v774
        %1563 = vmatprep.subr.mxu0 %v777
        %1564 = vmatpush1.msra.mxu0 %v776
        %1565 = vmatprep.subr.mxu0 %v779
        %1566 = vmatpush1.msra.mxu0 %v778
        %1567 = vmatprep.mubr.f32.mxu0 %v309
        %1568 = vmatmul.mubr.f32.gmra.mrb[0].mxu0 %v308
        %v1569 = vpop.f32.mrb[0].mxu0
        %v1570 = vadd.f32 %v1445, %v1569
        %v1571 = vpop.f32.mrb[0].mxu0
        %v1572 = vadd.f32 %v1447, %v1571
        %1573 = vmatprep.mubr.f32.mxu0 %v325
        %1574 = vmatmul.mubr.f32.gmra.mrb[0].mxu0 %v324
        %v1575 = vpop.f32.mrb[0].mxu0
        %v1576 = vadd.f32 %v1451, %v1575
        %v1577 = vpop.f32.mrb[0].mxu0
        %v1578 = vadd.f32 %v1453, %v1577
        %1579 = vmatprep.mubr.f32.mxu0 %v341
        %1580 = vmatmul.mubr.f32.gmra.mrb[0].mxu0 %v340
        %v1581 = vpop.f32.mrb[0].mxu0
        %v1582 = vadd.f32 %v1457, %v1581
        %v1583 = vpop.f32.mrb[0].mxu0
        %v1584 = vadd.f32 %v1459, %v1583
        %1585 = vmatprep.mubr.f32.mxu0 %v357
        %1586 = vmatmul.mubr.f32.gmra.mrb[0].mxu0 %v356
        %v1587 = vpop.f32.mrb[0].mxu0
        %v1588 = vadd.f32 %v1463, %v1587
        %v1589 = vpop.f32.mrb[0].mxu0
        %v1590 = vadd.f32 %v1465, %v1589
        %1591 = vmatprep.mubr.f32.mxu0 %v373
        %1592 = vmatmul.mubr.f32.gmra.mrb[0].mxu0 %v372
        %v1593 = vpop.f32.mrb[0].mxu0
        %v1594 = vadd.f32 %v1469, %v1593
        %v1595 = vpop.f32.mrb[0].mxu0
        %v1596 = vadd.f32 %v1471, %v1595
        %1597 = vmatprep.mubr.f32.mxu0 %v389
        %1598 = vmatmul.mubr.f32.gmra.mrb[0].mxu0 %v388
        %v1599 = vpop.f32.mrb[0].mxu0
        %v1600 = vadd.f32 %v1475, %v1599
        %v1601 = vpop.f32.mrb[0].mxu0
        %v1602 = vadd.f32 %v1477, %v1601
        %1603 = vmatprep.mubr.f32.mxu0 %v405
        %1604 = vmatmul.mubr.f32.gmra.mrb[0].mxu0 %v404
        %v1605 = vpop.f32.mrb[0].mxu0
        %v1606 = vadd.f32 %v1481, %v1605
        %v1607 = vpop.f32.mrb[0].mxu0
        %v1608 = vadd.f32 %v1483, %v1607
        %1609 = vmatprep.mubr.f32.mxu0 %v421
        %1610 = vmatmul.mubr.f32.gmra.mrb[0].mxu0 %v420
        %v1611 = vpop.f32.mrb[0].mxu0
        %v1612 = vadd.f32 %v1487, %v1611
        %v1613 = vpop.f32.mrb[0].mxu0
        %v1614 = vadd.f32 %v1489, %v1613
        %1615 = vmatprep.mubr.f32.mxu0 %v437
        %1616 = vmatmul.mubr.f32.gmra.mrb[0].mxu0 %v436
        %v1617 = vpop.f32.mrb[0].mxu0
        %v1618 = vadd.f32 %v1493, %v1617
        %v1619 = vpop.f32.mrb[0].mxu0
        %v1620 = vadd.f32 %v1495, %v1619
        %1621 = vmatprep.mubr.f32.mxu0 %v453
        %1622 = vmatmul.mubr.f32.gmra.mrb[0].mxu0 %v452
        %v1623 = vpop.f32.mrb[0].mxu0
        %v1624 = vadd.f32 %v1499, %v1623
        %v1625 = vpop.f32.mrb[0].mxu0
        %v1626 = vadd.f32 %v1501, %v1625
        %1627 = vdwg.mxu0
        %1628 = vmatprep.subr.mxu0 %v781
        %1629 = vmatpush1.msra.mxu0 %v780
        %1630 = vmatprep.subr.mxu0 %v783
        %1631 = vmatpush1.msra.mxu0 %v782
        %1632 = vmatprep.subr.mxu0 %v785
        %1633 = vmatpush1.msra.mxu0 %v784
        %1634 = vmatprep.subr.mxu0 %v787
        %1635 = vmatpush1.msra.mxu0 %v786
        %1636 = vmatprep.subr.mxu0 %v789
        %1637 = vmatpush1.msra.mxu0 %v788
        %1638 = vmatprep.subr.mxu0 %v791
        %1639 = vmatpush1.msra.mxu0 %v790
        %1640 = vmatprep.subr.mxu0 %v793
        %1641 = vmatpush1.msra.mxu0 %v792
        %1642 = vmatprep.subr.mxu0 %v795
        %1643 = vmatpush1.msra.mxu0 %v794
        %1644 = vmatprep.subr.mxu0 %v797
        %1645 = vmatpush1.msra.mxu0 %v796
        %1646 = vmatprep.subr.mxu0 %v799
        %1647 = vmatpush1.msra.mxu0 %v798
        %1648 = vmatprep.subr.mxu0 %v801
        %1649 = vmatpush1.msra.mxu0 %v800
        %1650 = vmatprep.subr.mxu0 %v803
        %1651 = vmatpush1.msra.mxu0 %v802
        %1652 = vmatprep.subr.mxu0 %v805
        %1653 = vmatpush1.msra.mxu0 %v804
        %1654 = vmatprep.subr.mxu0 %v807
        %1655 = vmatpush1.msra.mxu0 %v806
        %1656 = vmatprep.subr.mxu0 %v809
        %1657 = vmatpush1.msra.mxu0 %v808
        %1658 = vmatprep.subr.mxu0 %v811
        %1659 = vmatpush1.msra.mxu0 %v810
        %1660 = vmatprep.subr.mxu0 %v813
        %1661 = vmatpush1.msra.mxu0 %v812
        %1662 = vmatprep.subr.mxu0 %v815
        %1663 = vmatpush1.msra.mxu0 %v814
        %1664 = vmatprep.subr.mxu0 %v817
        %1665 = vmatpush1.msra.mxu0 %v816
        %1666 = vmatprep.subr.mxu0 %v819
        %1667 = vmatpush1.msra.mxu0 %v818
        %1668 = vmatprep.subr.mxu0 %v821
        %1669 = vmatpush1.msra.mxu0 %v820
        %1670 = vmatprep.subr.mxu0 %v823
        %1671 = vmatpush1.msra.mxu0 %v822
        %1672 = vmatprep.subr.mxu0 %v825
        %1673 = vmatpush1.msra.mxu0 %v824
        %1674 = vmatprep.subr.mxu0 %v827
        %1675 = vmatpush1.msra.mxu0 %v826
        %1676 = vmatprep.subr.mxu0 %v829
        %1677 = vmatpush1.msra.mxu0 %v828
        %1678 = vmatprep.subr.mxu0 %v831
        %1679 = vmatpush1.msra.mxu0 %v830
        %1680 = vmatprep.subr.mxu0 %v833
        %1681 = vmatpush1.msra.mxu0 %v832
        %1682 = vmatprep.subr.mxu0 %v835
        %1683 = vmatpush1.msra.mxu0 %v834
        %1684 = vmatprep.subr.mxu0 %v837
        %1685 = vmatpush1.msra.mxu0 %v836
        %1686 = vmatprep.subr.mxu0 %v839
        %1687 = vmatpush1.msra.mxu0 %v838
        %1688 = vmatprep.subr.mxu0 %v841
        %1689 = vmatpush1.msra.mxu0 %v840
        %1690 = vmatprep.subr.mxu0 %v843
        %1691 = vmatpush1.msra.mxu0 %v842
        %1692 = vmatprep.mubr.f32.mxu0 %v311
        %1693 = vmatmul.mubr.f32.gmra.mrb[0].mxu0 %v310
        %v1694 = vpop.f32.mrb[0].mxu0
        %v1695 = vadd.f32 %v1570, %v1694
        %v1696 = vpop.f32.mrb[0].mxu0
        %v1697 = vadd.f32 %v1572, %v1696
        %1698 = vmatprep.mubr.f32.mxu0 %v327
        %1699 = vmatmul.mubr.f32.gmra.mrb[0].mxu0 %v326
        %v1700 = vpop.f32.mrb[0].mxu0
        %v1701 = vadd.f32 %v1576, %v1700
        %v1702 = vpop.f32.mrb[0].mxu0
        %v1703 = vadd.f32 %v1578, %v1702
        %1704 = vmatprep.mubr.f32.mxu0 %v343
        %1705 = vmatmul.mubr.f32.gmra.mrb[0].mxu0 %v342
        %v1706 = vpop.f32.mrb[0].mxu0
        %v1707 = vadd.f32 %v1582, %v1706
        %v1708 = vpop.f32.mrb[0].mxu0
        %v1709 = vadd.f32 %v1584, %v1708
        %1710 = vmatprep.mubr.f32.mxu0 %v359
        %1711 = vmatmul.mubr.f32.gmra.mrb[0].mxu0 %v358
        %v1712 = vpop.f32.mrb[0].mxu0
        %v1713 = vadd.f32 %v1588, %v1712
        %v1714 = vpop.f32.mrb[0].mxu0
        %v1715 = vadd.f32 %v1590, %v1714
        %1716 = vmatprep.mubr.f32.mxu0 %v375
        %1717 = vmatmul.mubr.f32.gmra.mrb[0].mxu0 %v374
        %v1718 = vpop.f32.mrb[0].mxu0
        %v1719 = vadd.f32 %v1594, %v1718
        %v1720 = vpop.f32.mrb[0].mxu0
        %v1721 = vadd.f32 %v1596, %v1720
        %1722 = vmatprep.mubr.f32.mxu0 %v391
        %1723 = vmatmul.mubr.f32.gmra.mrb[0].mxu0 %v390
        %v1724 = vpop.f32.mrb[0].mxu0
        %v1725 = vadd.f32 %v1600, %v1724
        %v1726 = vpop.f32.mrb[0].mxu0
        %v1727 = vadd.f32 %v1602, %v1726
        %1728 = vmatprep.mubr.f32.mxu0 %v407
        %1729 = vmatmul.mubr.f32.gmra.mrb[0].mxu0 %v406
        %v1730 = vpop.f32.mrb[0].mxu0
        %v1731 = vadd.f32 %v1606, %v1730
        %v1732 = vpop.f32.mrb[0].mxu0
        %v1733 = vadd.f32 %v1608, %v1732
        %1734 = vmatprep.mubr.f32.mxu0 %v423
        %1735 = vmatmul.mubr.f32.gmra.mrb[0].mxu0 %v422
        %v1736 = vpop.f32.mrb[0].mxu0
        %v1737 = vadd.f32 %v1612, %v1736
        %v1738 = vpop.f32.mrb[0].mxu0
        %v1739 = vadd.f32 %v1614, %v1738
        %1740 = vmatprep.mubr.f32.mxu0 %v439
        %1741 = vmatmul.mubr.f32.gmra.mrb[0].mxu0 %v438
        %v1742 = vpop.f32.mrb[0].mxu0
        %v1743 = vadd.f32 %v1618, %v1742
        %v1744 = vpop.f32.mrb[0].mxu0
        %v1745 = vadd.f32 %v1620, %v1744
        %1746 = vmatprep.mubr.f32.mxu0 %v455
        %1747 = vmatmul.mubr.f32.gmra.mrb[0].mxu0 %v454
        %v1748 = vpop.f32.mrb[0].mxu0
        %v1749 = vadd.f32 %v1624, %v1748
        %v1750 = vpop.f32.mrb[0].mxu0
        %v1751 = vadd.f32 %v1626, %v1750
        %1752 = vdwg.mxu0
        %1753 = vmatprep.subr.mxu0 %v845
        %1754 = vmatpush1.msra.mxu0 %v844
        %1755 = vmatprep.subr.mxu0 %v847
        %1756 = vmatpush1.msra.mxu0 %v846
        %1757 = vmatprep.subr.mxu0 %v849
        %1758 = vmatpush1.msra.mxu0 %v848
        %1759 = vmatprep.subr.mxu0 %v851
        %1760 = vmatpush1.msra.mxu0 %v850
        %1761 = vmatprep.subr.mxu0 %v853
        %1762 = vmatpush1.msra.mxu0 %v852
        %1763 = vmatprep.subr.mxu0 %v855
        %1764 = vmatpush1.msra.mxu0 %v854
        %1765 = vmatprep.subr.mxu0 %v857
        %1766 = vmatpush1.msra.mxu0 %v856
        %1767 = vmatprep.subr.mxu0 %v859
        %1768 = vmatpush1.msra.mxu0 %v858
        %1769 = vmatprep.subr.mxu0 %v861
        %1770 = vmatpush1.msra.mxu0 %v860
        %1771 = vmatprep.subr.mxu0 %v863
        %1772 = vmatpush1.msra.mxu0 %v862
        %1773 = vmatprep.subr.mxu0 %v865
        %1774 = vmatpush1.msra.mxu0 %v864
        %1775 = vmatprep.subr.mxu0 %v867
        %1776 = vmatpush1.msra.mxu0 %v866
        %1777 = vmatprep.subr.mxu0 %v869
        %1778 = vmatpush1.msra.mxu0 %v868
        %1779 = vmatprep.subr.mxu0 %v871
        %1780 = vmatpush1.msra.mxu0 %v870
        %1781 = vmatprep.subr.mxu0 %v873
        %1782 = vmatpush1.msra.mxu0 %v872
        %1783 = vmatprep.subr.mxu0 %v875
        %1784 = vmatpush1.msra.mxu0 %v874
        %1785 = vmatprep.subr.mxu0 %v877
        %1786 = vmatpush1.msra.mxu0 %v876
        %1787 = vmatprep.subr.mxu0 %v879
        %1788 = vmatpush1.msra.mxu0 %v878
        %1789 = vmatprep.subr.mxu0 %v881
        %1790 = vmatpush1.msra.mxu0 %v880
        %1791 = vmatprep.subr.mxu0 %v883
        %1792 = vmatpush1.msra.mxu0 %v882
        %1793 = vmatprep.subr.mxu0 %v885
        %1794 = vmatpush1.msra.mxu0 %v884
        %1795 = vmatprep.subr.mxu0 %v887
        %1796 = vmatpush1.msra.mxu0 %v886
        %1797 = vmatprep.subr.mxu0 %v889
        %1798 = vmatpush1.msra.mxu0 %v888
        %1799 = vmatprep.subr.mxu0 %v891
        %1800 = vmatpush1.msra.mxu0 %v890
        %1801 = vmatprep.subr.mxu0 %v893
        %1802 = vmatpush1.msra.mxu0 %v892
        %1803 = vmatprep.subr.mxu0 %v895
        %1804 = vmatpush1.msra.mxu0 %v894
        %1805 = vmatprep.subr.mxu0 %v897
        %1806 = vmatpush1.msra.mxu0 %v896
        %1807 = vmatprep.subr.mxu0 %v899
        %1808 = vmatpush1.msra.mxu0 %v898
        %1809 = vmatprep.subr.mxu0 %v901
        %1810 = vmatpush1.msra.mxu0 %v900
        %1811 = vmatprep.subr.mxu0 %v903
        %1812 = vmatpush1.msra.mxu0 %v902
        %1813 = vmatprep.subr.mxu0 %v905
        %1814 = vmatpush1.msra.mxu0 %v904
        %1815 = vmatprep.subr.mxu0 %v907
        %1816 = vmatpush1.msra.mxu0 %v906
        %1817 = vmatprep.mubr.f32.mxu0 %v313
        %1818 = vmatmul.mubr.f32.gmra.mrb[0].mxu0 %v312
        %v1819 = vpop.f32.mrb[0].mxu0
        %v1820 = vadd.f32 %v1695, %v1819
        %v1821 = vpop.f32.mrb[0].mxu0
        %v1822 = vadd.f32 %v1697, %v1821
        %1823 = vmatprep.mubr.f32.mxu0 %v329
        %1824 = vmatmul.mubr.f32.gmra.mrb[0].mxu0 %v328
        %v1825 = vpop.f32.mrb[0].mxu0
        %v1826 = vadd.f32 %v1701, %v1825
        %v1827 = vpop.f32.mrb[0].mxu0
        %v1828 = vadd.f32 %v1703, %v1827
        %1829 = vmatprep.mubr.f32.mxu0 %v345
        %1830 = vmatmul.mubr.f32.gmra.mrb[0].mxu0 %v344
        %v1831 = vpop.f32.mrb[0].mxu0
        %v1832 = vadd.f32 %v1707, %v1831
        %v1833 = vpop.f32.mrb[0].mxu0
        %v1834 = vadd.f32 %v1709, %v1833
        %1835 = vmatprep.mubr.f32.mxu0 %v361
        %1836 = vmatmul.mubr.f32.gmra.mrb[0].mxu0 %v360
        %v1837 = vpop.f32.mrb[0].mxu0
        %v1838 = vadd.f32 %v1713, %v1837
        %v1839 = vpop.f32.mrb[0].mxu0
        %v1840 = vadd.f32 %v1715, %v1839
        %1841 = vmatprep.mubr.f32.mxu0 %v377
        %1842 = vmatmul.mubr.f32.gmra.mrb[0].mxu0 %v376
        %v1843 = vpop.f32.mrb[0].mxu0
        %v1844 = vadd.f32 %v1719, %v1843
        %v1845 = vpop.f32.mrb[0].mxu0
        %v1846 = vadd.f32 %v1721, %v1845
        %1847 = vmatprep.mubr.f32.mxu0 %v393
        %1848 = vmatmul.mubr.f32.gmra.mrb[0].mxu0 %v392
        %v1849 = vpop.f32.mrb[0].mxu0
        %v1850 = vadd.f32 %v1725, %v1849
        %v1851 = vpop.f32.mrb[0].mxu0
        %v1852 = vadd.f32 %v1727, %v1851
        %1853 = vmatprep.mubr.f32.mxu0 %v409
        %1854 = vmatmul.mubr.f32.gmra.mrb[0].mxu0 %v408
        %v1855 = vpop.f32.mrb[0].mxu0
        %v1856 = vadd.f32 %v1731, %v1855
        %v1857 = vpop.f32.mrb[0].mxu0
        %v1858 = vadd.f32 %v1733, %v1857
        %1859 = vmatprep.mubr.f32.mxu0 %v425
        %1860 = vmatmul.mubr.f32.gmra.mrb[0].mxu0 %v424
        %v1861 = vpop.f32.mrb[0].mxu0
        %v1862 = vadd.f32 %v1737, %v1861
        %v1863 = vpop.f32.mrb[0].mxu0
        %v1864 = vadd.f32 %v1739, %v1863
        %1865 = vmatprep.mubr.f32.mxu0 %v441
        %1866 = vmatmul.mubr.f32.gmra.mrb[0].mxu0 %v440
        %v1867 = vpop.f32.mrb[0].mxu0
        %v1868 = vadd.f32 %v1743, %v1867
        %v1869 = vpop.f32.mrb[0].mxu0
        %v1870 = vadd.f32 %v1745, %v1869
        %1871 = vmatprep.mubr.f32.mxu0 %v457
        %1872 = vmatmul.mubr.f32.gmra.mrb[0].mxu0 %v456
        %v1873 = vpop.f32.mrb[0].mxu0
        %v1874 = vadd.f32 %v1749, %v1873
        %v1875 = vpop.f32.mrb[0].mxu0
        %v1876 = vadd.f32 %v1751, %v1875
        %1877 = vdwg.mxu0
        %1878 = vmatprep.subr.mxu0 %v909
        %1879 = vmatpush1.msra.mxu0 %v908
        %1880 = vmatprep.subr.mxu0 %v911
        %1881 = vmatpush1.msra.mxu0 %v910
        %1882 = vmatprep.subr.mxu0 %v913
        %1883 = vmatpush1.msra.mxu0 %v912
        %1884 = vmatprep.subr.mxu0 %v915
        %1885 = vmatpush1.msra.mxu0 %v914
        %1886 = vmatprep.subr.mxu0 %v917
        %1887 = vmatpush1.msra.mxu0 %v916
        %1888 = vmatprep.subr.mxu0 %v919
        %1889 = vmatpush1.msra.mxu0 %v918
        %1890 = vmatprep.subr.mxu0 %v921
        %1891 = vmatpush1.msra.mxu0 %v920
        %1892 = vmatprep.subr.mxu0 %v923
        %1893 = vmatpush1.msra.mxu0 %v922
        %1894 = vmatprep.subr.mxu0 %v925
        %1895 = vmatpush1.msra.mxu0 %v924
        %1896 = vmatprep.subr.mxu0 %v927
        %1897 = vmatpush1.msra.mxu0 %v926
        %1898 = vmatprep.subr.mxu0 %v929
        %1899 = vmatpush1.msra.mxu0 %v928
        %1900 = vmatprep.subr.mxu0 %v931
        %1901 = vmatpush1.msra.mxu0 %v930
        %1902 = vmatprep.subr.mxu0 %v933
        %1903 = vmatpush1.msra.mxu0 %v932
        %1904 = vmatprep.subr.mxu0 %v935
        %1905 = vmatpush1.msra.mxu0 %v934
        %1906 = vmatprep.subr.mxu0 %v937
        %1907 = vmatpush1.msra.mxu0 %v936
        %1908 = vmatprep.subr.mxu0 %v939
        %1909 = vmatpush1.msra.mxu0 %v938
        %1910 = vmatprep.subr.mxu0 %v941
        %1911 = vmatpush1.msra.mxu0 %v940
        %1912 = vmatprep.subr.mxu0 %v943
        %1913 = vmatpush1.msra.mxu0 %v942
        %1914 = vmatprep.subr.mxu0 %v945
        %1915 = vmatpush1.msra.mxu0 %v944
        %1916 = vmatprep.subr.mxu0 %v947
        %1917 = vmatpush1.msra.mxu0 %v946
        %1918 = vmatprep.subr.mxu0 %v949
        %1919 = vmatpush1.msra.mxu0 %v948
        %1920 = vmatprep.subr.mxu0 %v951
        %1921 = vmatpush1.msra.mxu0 %v950
        %1922 = vmatprep.subr.mxu0 %v953
        %1923 = vmatpush1.msra.mxu0 %v952
        %1924 = vmatprep.subr.mxu0 %v955
        %1925 = vmatpush1.msra.mxu0 %v954
        %1926 = vmatprep.subr.mxu0 %v957
        %1927 = vmatpush1.msra.mxu0 %v956
        %1928 = vmatprep.subr.mxu0 %v959
        %1929 = vmatpush1.msra.mxu0 %v958
        %1930 = vmatprep.subr.mxu0 0.0
        %1931 = vmatpush1.msra.mxu0 0.0
        %1932 = vmatprep.subr.mxu0 0.0
        %1933 = vmatpush1.msra.mxu0 0.0
        %1934 = vmatprep.subr.mxu0 0.0
        %1935 = vmatpush1.msra.mxu0 0.0
        %1936 = vmatprep.subr.mxu0 0.0
        %1937 = vmatpush1.msra.mxu0 0.0
        %1938 = vmatprep.subr.mxu0 0.0
        %1939 = vmatpush1.msra.mxu0 0.0
        %1940 = vmatprep.subr.mxu0 0.0
        %1941 = vmatpush1.msra.mxu0 0.0
        %1942 = vmatprep.mubr.f32.mxu0 %v974
        %1943 = vmatmul.mubr.f32.gmra.mrb[0].mxu0 %v314
        %v1944 = vpop.f32.mrb[0].mxu0
        %v1945 = vadd.f32 %v1820, %v1944
        %v1946 = vpop.f32.mrb[0].mxu0
        %v1947 = vadd.f32 %v1822, %v1946
        %1948 = vmatprep.mubr.f32.mxu0 %v977
        %1949 = vmatmul.mubr.f32.gmra.mrb[0].mxu0 %v330
        %v1950 = vpop.f32.mrb[0].mxu0
        %v1951 = vadd.f32 %v1826, %v1950
        %v1952 = vpop.f32.mrb[0].mxu0
        %v1953 = vadd.f32 %v1828, %v1952
        %1954 = vmatprep.mubr.f32.mxu0 %v980
        %1955 = vmatmul.mubr.f32.gmra.mrb[0].mxu0 %v346
        %v1956 = vpop.f32.mrb[0].mxu0
        %v1957 = vadd.f32 %v1832, %v1956
        %v1958 = vpop.f32.mrb[0].mxu0
        %v1959 = vadd.f32 %v1834, %v1958
        %1960 = vmatprep.mubr.f32.mxu0 %v983
        %1961 = vmatmul.mubr.f32.gmra.mrb[0].mxu0 %v362
        %v1962 = vpop.f32.mrb[0].mxu0
        %v1963 = vadd.f32 %v1838, %v1962
        %v1964 = vpop.f32.mrb[0].mxu0
        %v1965 = vadd.f32 %v1840, %v1964
        %1966 = vmatprep.mubr.f32.mxu0 %v986
        %1967 = vmatmul.mubr.f32.gmra.mrb[0].mxu0 %v378
        %v1968 = vpop.f32.mrb[0].mxu0
        %v1969 = vadd.f32 %v1844, %v1968
        %v1970 = vpop.f32.mrb[0].mxu0
        %v1971 = vadd.f32 %v1846, %v1970
        %1972 = vmatprep.mubr.f32.mxu0 %v989
        %1973 = vmatmul.mubr.f32.gmra.mrb[0].mxu0 %v394
        %v1974 = vpop.f32.mrb[0].mxu0
        %v1975 = vadd.f32 %v1850, %v1974
        %v1976 = vpop.f32.mrb[0].mxu0
        %v1977 = vadd.f32 %v1852, %v1976
        %1978 = vmatprep.mubr.f32.mxu0 %v992
        %1979 = vmatmul.mubr.f32.gmra.mrb[0].mxu0 %v410
        %v1980 = vpop.f32.mrb[0].mxu0
        %v1981 = vadd.f32 %v1856, %v1980
        %v1982 = vpop.f32.mrb[0].mxu0
        %v1983 = vadd.f32 %v1858, %v1982
        %1984 = vmatprep.mubr.f32.mxu0 %v995
        %1985 = vmatmul.mubr.f32.gmra.mrb[0].mxu0 %v426
        %v1986 = vpop.f32.mrb[0].mxu0
        %v1987 = vadd.f32 %v1862, %v1986
        %v1988 = vpop.f32.mrb[0].mxu0
        %v1989 = vadd.f32 %v1864, %v1988
        %1990 = vmatprep.mubr.f32.mxu0 %v998
        %1991 = vmatmul.mubr.f32.gmra.mrb[0].mxu0 %v442
        %v1992 = vpop.f32.mrb[0].mxu0
        %v1993 = vadd.f32 %v1868, %v1992
        %v1994 = vpop.f32.mrb[0].mxu0
        %v1995 = vadd.f32 %v1870, %v1994
        %1996 = vmatprep.mubr.f32.mxu0 %v1001
        %1997 = vmatmul.mubr.f32.gmra.mrb[0].mxu0 %v458
        %v1998 = vpop.f32.mrb[0].mxu0
        %v1999 = vadd.f32 %v1874, %v1998
        %v2000 = vpop.f32.mrb[0].mxu0
        %v2001 = vadd.f32 %v1876, %v2000
        %2002 = vdwg.mxu0
        %v2003 = vtanh.pop %v1945
        %v2004 = vtanh.pop %v1947
        %v2005 = vtanh.pop %v1951
        %v2006 = vtanh.pop %v1953
        %v2007 = vtanh.pop %v1957
        %v2008 = vtanh.pop %v1959
        %v2009 = vtanh.pop %v1963
        %v2010 = vtanh.pop %v1965
        %v2011 = vtanh.pop %v1969
        %v2012 = vtanh.pop %v1971
        %v2013 = vtanh.pop %v1975
        %v2014 = vtanh.pop %v1977
        %v2015 = vtanh.pop %v1981
        %v2016 = vtanh.pop %v1983
        %v2017 = vtanh.pop %v1987
        %v2018 = vtanh.pop %v1989
        %v2019 = vtanh.pop %v1993
        %v2020 = vtanh.pop %v1995
        %v2021 = vtanh.pop %v1999
        %v2022 = vtanh.pop %v2001
        %v2023 = vld [vmem:[#allocation8] sm:$0xff]
        %v2024 = vld [vmem:[#allocation8 + $0x8] sm:$0xff]
        %v2025 = vld [vmem:[#allocation8 + $0x10] sm:$0xff]
        %v2026 = vld [vmem:[#allocation8 + $0x18] sm:$0xff]
        %v2027 = vld [vmem:[#allocation8 + $0x20] sm:$0xff]
        %v2028 = vld [vmem:[#allocation8 + $0x28] sm:$0xff]
        %v2029 = vld [vmem:[#allocation8 + $0x30] sm:$0xff]
        %v2030 = vld [vmem:[#allocation8 + $0x38] sm:$0xff]
        %v2031 = vld [vmem:[#allocation8 + $0x40] sm:$0xff]
        %v2032 = vld [vmem:[#allocation8 + $0x48] sm:$0xff]
        %v2033 = vld [vmem:[#allocation8 + $0x50] sm:$0xff]
        %v2034 = vld [vmem:[#allocation8 + $0x58] sm:$0xff]
        %v2035 = vld [vmem:[#allocation8 + $0x60] sm:$0xff]
        %v2036 = vld [vmem:[#allocation8 + $0x68] sm:$0xff]
        %v2037 = vld [vmem:[#allocation8 + $0x70] sm:$0xff]
        %v2038 = vld [vmem:[#allocation8 + $0x78] sm:$0xff]
        %v2039 = vld [vmem:[#allocation8 + $0x80] sm:$0xff]
        %v2040 = vld [vmem:[#allocation8 + $0x88] sm:$0xff]
        %v2041 = vld [vmem:[#allocation8 + $0x90] sm:$0xff]
        %v2042 = vld [vmem:[#allocation8 + $0x98] sm:$0xff]
        %v2043 = vld [vmem:[#allocation8 + $0xa0] sm:$0xff]
        %v2044 = vld [vmem:[#allocation8 + $0xa8] sm:$0xff]
        %v2045 = vld [vmem:[#allocation8 + $0xb0] sm:$0xff]
        %v2046 = vld [vmem:[#allocation8 + $0xb8] sm:$0xff]
        %v2047 = vld [vmem:[#allocation8 + $0xc0] sm:$0xff]
        %v2048 = vld [vmem:[#allocation8 + $0xc8] sm:$0xff]
        %v2049 = vld [vmem:[#allocation8 + $0xd0] sm:$0xff]
        %v2050 = vld [vmem:[#allocation8 + $0xd8] sm:$0xff]
        %v2051 = vld [vmem:[#allocation8 + $0xe0] sm:$0xff]
        %v2052 = vld [vmem:[#allocation8 + $0xe8] sm:$0xff]
        %v2053 = vld [vmem:[#allocation8 + $0xf0] sm:$0xff]
        %v2054 = vld [vmem:[#allocation8 + $0xf8] sm:$0xff]
        %v2055 = vld [vmem:[#allocation10] sm:$0x1]
        %v2057 = vlaneseq
        %v2058 = vshrl.u32 %v2057, 7
        %v2059 = vsub.s32 0, %v2058
        %v2060 = vrot.slane %v2055, %v2059
        %2062 = vmatprep.subr.mxu0 0.0
        %2063 = vmatpush1.msra.mxu0 %v2023
        %2064 = vmatprep.subr.mxu0 0.0
        %2065 = vmatpush1.msra.mxu0 %v2024
        %2066 = vmatprep.subr.mxu0 0.0
        %2067 = vmatpush1.msra.mxu0 %v2025
        %2068 = vmatprep.subr.mxu0 0.0
        %2069 = vmatpush1.msra.mxu0 %v2026
        %2070 = vmatprep.subr.mxu0 0.0
        %2071 = vmatpush1.msra.mxu0 %v2027
        %2072 = vmatprep.subr.mxu0 0.0
        %2073 = vmatpush1.msra.mxu0 %v2028
        %2074 = vmatprep.subr.mxu0 0.0
        %2075 = vmatpush1.msra.mxu0 %v2029
        %2076 = vmatprep.subr.mxu0 0.0
        %2077 = vmatpush1.msra.mxu0 %v2030
        %2078 = vmatprep.subr.mxu0 0.0
        %2079 = vmatpush1.msra.mxu0 %v2031
        %2080 = vmatprep.subr.mxu0 0.0
        %2081 = vmatpush1.msra.mxu0 %v2032
        %2082 = vmatprep.subr.mxu0 0.0
        %2083 = vmatpush1.msra.mxu0 %v2033
        %2084 = vmatprep.subr.mxu0 0.0
        %2085 = vmatpush1.msra.mxu0 %v2034
        %2086 = vmatprep.subr.mxu0 0.0
        %2087 = vmatpush1.msra.mxu0 %v2035
        %2088 = vmatprep.subr.mxu0 0.0
        %2089 = vmatpush1.msra.mxu0 %v2036
        %2090 = vmatprep.subr.mxu0 0.0
        %2091 = vmatpush1.msra.mxu0 %v2037
        %2092 = vmatprep.subr.mxu0 0.0
        %2093 = vmatpush1.msra.mxu0 %v2038
        %2094 = vmatprep.subr.mxu0 0.0
        %2095 = vmatpush1.msra.mxu0 %v2039
        %2096 = vmatprep.subr.mxu0 0.0
        %2097 = vmatpush1.msra.mxu0 %v2040
        %2098 = vmatprep.subr.mxu0 0.0
        %2099 = vmatpush1.msra.mxu0 %v2041
        %2100 = vmatprep.subr.mxu0 0.0
        %2101 = vmatpush1.msra.mxu0 %v2042
        %2102 = vmatprep.subr.mxu0 0.0
        %2103 = vmatpush1.msra.mxu0 %v2043
        %2104 = vmatprep.subr.mxu0 0.0
        %2105 = vmatpush1.msra.mxu0 %v2044
        %2106 = vmatprep.subr.mxu0 0.0
        %2107 = vmatpush1.msra.mxu0 %v2045
        %2108 = vmatprep.subr.mxu0 0.0
        %2109 = vmatpush1.msra.mxu0 %v2046
        %2110 = vmatprep.subr.mxu0 0.0
        %2111 = vmatpush1.msra.mxu0 %v2047
        %2112 = vmatprep.subr.mxu0 0.0
        %2113 = vmatpush1.msra.mxu0 %v2048
        %2114 = vmatprep.subr.mxu0 0.0
        %2115 = vmatpush1.msra.mxu0 %v2049
        %2116 = vmatprep.subr.mxu0 0.0
        %2117 = vmatpush1.msra.mxu0 %v2050
        %2118 = vmatprep.subr.mxu0 0.0
        %2119 = vmatpush1.msra.mxu0 %v2051
        %2120 = vmatprep.subr.mxu0 0.0
        %2121 = vmatpush1.msra.mxu0 %v2052
        %2122 = vmatprep.subr.mxu0 0.0
        %2123 = vmatpush1.msra.mxu0 %v2053
        %2124 = vmatprep.subr.mxu0 0.0
        %2125 = vmatpush1.msra.mxu0 %v2054
        %2126 = vmatprep.mubr.f32.mxu0 %v2004
        %2127 = vmatmul.mubr.f32.gmra.mrb[0].mxu0 %v2003
        %v2128 = vpop.f32.mrb[0].mxu0
        %v2129 = vadd.f32 %v2060, %v2128
        %v2130 = vpop.f32.mrb[0].mxu0
        %2131 = vmatprep.mubr.f32.mxu0 %v2006
        %2132 = vmatmul.mubr.f32.gmra.mrb[0].mxu0 %v2005
        %v2133 = vpop.f32.mrb[0].mxu0
        %v2134 = vadd.f32 %v2060, %v2133
        %v2135 = vpop.f32.mrb[0].mxu0
        %2136 = vmatprep.mubr.f32.mxu0 %v2008
        %2137 = vmatmul.mubr.f32.gmra.mrb[0].mxu0 %v2007
        %v2138 = vpop.f32.mrb[0].mxu0
        %v2139 = vadd.f32 %v2060, %v2138
        %v2140 = vpop.f32.mrb[0].mxu0
        %2141 = vmatprep.mubr.f32.mxu0 %v2010
        %2142 = vmatmul.mubr.f32.gmra.mrb[0].mxu0 %v2009
        %v2143 = vpop.f32.mrb[0].mxu0
        %v2144 = vadd.f32 %v2060, %v2143
        %v2145 = vpop.f32.mrb[0].mxu0
        %2146 = vmatprep.mubr.f32.mxu0 %v2012
        %2147 = vmatmul.mubr.f32.gmra.mrb[0].mxu0 %v2011
        %v2148 = vpop.f32.mrb[0].mxu0
        %v2149 = vadd.f32 %v2060, %v2148
        %v2150 = vpop.f32.mrb[0].mxu0
        %2151 = vmatprep.mubr.f32.mxu0 %v2014
        %2152 = vmatmul.mubr.f32.gmra.mrb[0].mxu0 %v2013
        %v2153 = vpop.f32.mrb[0].mxu0
        %v2154 = vadd.f32 %v2060, %v2153
        %v2155 = vpop.f32.mrb[0].mxu0
        %2156 = vmatprep.mubr.f32.mxu0 %v2016
        %2157 = vmatmul.mubr.f32.gmra.mrb[0].mxu0 %v2015
        %v2158 = vpop.f32.mrb[0].mxu0
        %v2159 = vadd.f32 %v2060, %v2158
        %v2160 = vpop.f32.mrb[0].mxu0
        %2161 = vmatprep.mubr.f32.mxu0 %v2018
        %2162 = vmatmul.mubr.f32.gmra.mrb[0].mxu0 %v2017
        %v2163 = vpop.f32.mrb[0].mxu0
        %v2164 = vadd.f32 %v2060, %v2163
        %v2165 = vpop.f32.mrb[0].mxu0
        %2166 = vmatprep.mubr.f32.mxu0 %v2020
        %2167 = vmatmul.mubr.f32.gmra.mrb[0].mxu0 %v2019
        %v2168 = vpop.f32.mrb[0].mxu0
        %v2169 = vadd.f32 %v2060, %v2168
        %v2170 = vpop.f32.mrb[0].mxu0
        %2171 = vmatprep.mubr.f32.mxu0 %v2022
        %2172 = vmatmul.mubr.f32.gmra.mrb[0].mxu0 %v2021
        %v2173 = vpop.f32.mrb[0].mxu0
        %v2174 = vadd.f32 %v2060, %v2173
        %v2175 = vpop.f32.mrb[0].mxu0
        %2176 = vdwg.mxu0
        %2177 = vst [vmem:[%s297] sm:$0xff] %v2129
        %2178 = vst [vmem:[%s297 + $0x8] sm:$0xff] %v2134
        %2179 = vst [vmem:[%s297 + $0x10] sm:$0xff] %v2139
        %2180 = vst [vmem:[%s297 + $0x18] sm:$0xff] %v2144
        %2181 = vst [vmem:[%s297 + $0x20] sm:$0xff] %v2149
        %2182 = vst [vmem:[%s297 + $0x28] sm:$0xff] %v2154
        %2183 = vst [vmem:[%s297 + $0x30] sm:$0xff] %v2159
        %2184 = vst [vmem:[%s297 + $0x38] sm:$0xff] %v2164
        %2185 = vst [vmem:[%s297 + $0x40] sm:$0xff] %v2169
        %2186 = vst [vmem:[%s297 + $0x48] sm:$0xff] %v2174
        %s2187 = sand.u32 %s142, 1
        %s2188 = scalar_lea.sflag [#allocation4], %s2187
        %s2189 = sand.u32 %s142, 1
        %s2190 = smul.addr %s2189, 80
        %s2191 = scalar_lea.vmem [#allocation11], %s2190
        // Predicated region
        $region61: #{tpu_custom_call.1} parent=39 // pred_check
          %p2192 = pneg %p152
        $region62: #{tpu_custom_call.1} parent=39 // pred_check_branch
          %2194 = sbr.rel (%p2192) target = $region64
        $region63: #{tpu_custom_call.1} parent=39 // pred_region
          %s2195 = smul.u32 10, %s24
          %s2197 = ssub.s32 1280, 1280
          %2198 = vsyncadd %s2188, %s2197
          %s2199 = smul.addr %s2195, 128
          %s2200 = scalar_lea.hbm %s5, %s2199
          %s2201 = sshll.u32 %s2191, 4
          %s2202 = int_to_ptr.vmem [resolvable:$true] %s2201
          %2207 = dma.vmem_to_hbm [thread:$0]  %s2202, 1280, %s2200, %s2188, 128, 128, 8
        $region64: #{tpu_custom_call.1} parent=39 // pred_fallthru
          _
      $region40: #{tpu_custom_call.1} parent=5 // pred_fallthru
        _
      %p2208 = scmp.le.s32.totalorder 2, %s19
      // Predicated region
      $region65: #{tpu_custom_call.1} parent=5 // pred_check
        %p2209 = pneg %p2208
      $region66: #{tpu_custom_call.1} parent=5 // pred_check_branch
        %2211 = sbr.rel (%p2209) target = $region68
      $region67: #{tpu_custom_call.1} parent=5 // pred_region
        %s2212 = ssub.s32 %s19, 2
        // Predicated region
        $region69: #{tpu_custom_call.1} parent=67 // pred_check
          %p2213 = pneg %p158
        $region70: #{tpu_custom_call.1} parent=67 // pred_check_branch
          %2215 = sbr.rel (%p2213) target = $region72
        $region71: #{tpu_custom_call.1} parent=67 // pred_region
          %s2216 = sand.u32 %s143, 1
          %s2217 = scalar_lea.sflag [#allocation4], %s2216
          %s2218 = sand.u32 %s143, 1
          %s2219 = smul.addr %s2218, 80
          %s2220 = scalar_lea.vmem [#allocation11], %s2219
          %2221 = dma.done %s2217, 1280
        $region72: #{tpu_custom_call.1} parent=67 // pred_fallthru
          _
      $region68: #{tpu_custom_call.1} parent=5 // pred_fallthru
        _
    $region6: #{tpu_custom_call.1} parent=1 // loop_footer
      %s23 = sadd.s32 1, %s19
    $region7: #{tpu_custom_call.1} parent=1 // loop_footer_branch
      %18 = sbr.rel target = $region3
    $region8: #{tpu_custom_call.1} parent=1 // loop_exit
      _
    %2222 = vsyncpa [#allocation3], 1
    %s2223 = scalar_lea.sflag [#allocation3], 1
    %2224 = vsyncpa %s2223, 1
    %2225 = vsyncpa [#allocation6], 1
    %2226 = vsyncpa [#allocation9], 1
    %2227 = vsyncpa [#allocation4], 1
    %s2228 = scalar_lea.sflag [#allocation4], 1
    %2229 = vsyncpa %s2228, 1

</llo_original>
